<compile_context>
chip_gen: v7x
topology: tpu7x:2x2x1
jax: 0.10.0
libtpu: 0.0.40
codegen_flags: <defaults>
</compile_context>

<pallas_src>
import jax
import jax.numpy as jnp
from jax.experimental import pallas as pl
from jax.experimental.pallas import tpu as pltpu

# Small shapes consistent with the module's forward pass.
BATCH = 4
PAD_B = 8          # pad batch rows to the f32 sublane height
SEQ = 8            # seq_length
IN_SIZE = 4        # input_size  -> flat = SEQ * IN_SIZE = 32
HIDDEN = 64        # hidden_size (ResNet)  (!= flat so block 0 has projection shortcut)
LSTM_H = 32        # lstm_hidden_size
GATES = 4 * LSTM_H # 128 lanes: stacked i/f/g/o gates
OUT = 16           # output_size
NUM_BLOCKS = 4
BN_EPS = 1e-5


def _elu(x):
    # PyTorch nn.ELU (alpha = 1.0)
    return jnp.where(x > 0, x, jnp.exp(jnp.minimum(x, 0.0)) - 1.0)


def _vmem():
    return pl.BlockSpec(memory_space=pltpu.MemorySpace.VMEM)


# ---------------------------------------------------------------------------
# Single fused Pallas kernel: 4 residual blocks + fc + LSTM + heads
# ---------------------------------------------------------------------------
def fused_forward_kernel(x_ref,
                         w1a_ref, b1a_ref, w2a_ref, b2a_ref, wsa_ref, bsa_ref,
                         w1s_ref, b1s_ref, w2s_ref, b2s_ref,
                         wcomp_ref, bcomp_ref, whh_ref,
                         whead_ref, bhead_ref,
                         o_ref):
    f32 = jnp.float32
    x = x_ref[...]                                                        # (8, 32)

    # --- residual block 0 (BN folded into Linear, projection shortcut) -----
    h = _elu(jnp.dot(x, w1a_ref[...], preferred_element_type=f32) + b1a_ref[...])
    # TODO(synk): nn.Dropout is identity in eval mode; stochastic dropout not modeled.
    h = jnp.dot(h, w2a_ref[...], preferred_element_type=f32) + b2a_ref[...]
    sc = jnp.dot(x, wsa_ref[...], preferred_element_type=f32) + bsa_ref[...]
    h = _elu(h + sc)                                                      # (8, 64)

    # --- residual blocks 1..3 (identity shortcut, BN folded) ---------------
    for k in range(NUM_BLOCKS - 1):                                       # static unroll
        y = _elu(jnp.dot(h, w1s_ref[k], preferred_element_type=f32) + b1s_ref[k])
        y = jnp.dot(y, w2s_ref[k], preferred_element_type=f32) + b2s_ref[k]
        h = _elu(y + h)

    # --- fc_to_lstm folded with the LSTM input projection: one matmul ------
    # xproj[:, t*128:(t+1)*128] == x_t @ [Wih_i|Wih_f|Wih_g|Wih_o] + biases
    xproj = jnp.dot(h, wcomp_ref[...], preferred_element_type=f32) + bcomp_ref[...]  # (8,1024)

    # --- LSTM recurrence: 8 steps, fully unrolled, 128-lane stacked gates --
    whh = whh_ref[...]                                                    # (32, 128)
    hh = jnp.zeros((PAD_B, LSTM_H), f32)
    cc = jnp.zeros((PAD_B, LSTM_H), f32)
    for t in range(SEQ):                                                  # static unroll
        gates = (xproj[:, t * GATES:(t + 1) * GATES]
                 + jnp.dot(hh, whh, preferred_element_type=f32))          # (8, 128)
        i = jax.nn.sigmoid(gates[:, 0 * LSTM_H:1 * LSTM_H])
        f = jax.nn.sigmoid(gates[:, 1 * LSTM_H:2 * LSTM_H])
        g = jnp.tanh(gates[:, 2 * LSTM_H:3 * LSTM_H])
        o = jax.nn.sigmoid(gates[:, 3 * LSTM_H:4 * LSTM_H])
        cc = f * cc + i * g
        hh = o * jnp.tanh(cc)

    # --- value/variance heads + size-1 softmax attention + fusion, folded --
    o_ref[...] = jnp.dot(hh, whead_ref[...], preferred_element_type=f32) + bhead_ref[...]


# ---------------------------------------------------------------------------
# Wrapper: host-side parameter folding + one pallas_call
# ---------------------------------------------------------------------------
@jax.jit
def forward(x, params):
    B = x.shape[0]
    xf = x.reshape(B, SEQ * IN_SIZE)                       # x.view(batch, -1)
    xp = jnp.pad(xf, ((0, PAD_B - B), (0, 0)))             # sublane-pad rows to 8

    # Fold eval-mode BatchNorm (scale, shift) into each Linear.
    def fold(w, b, s, t):
        return w * s, b * s + t

    blk0 = params["blocks"][0]
    w1a, b1a = fold(blk0["w1"], blk0["b1"], blk0["s1"], blk0["t1"])
    w2a, b2a = fold(blk0["w2"], blk0["b2"], blk0["s2"], blk0["t2"])
    wsa, bsa = fold(blk0["ws"], blk0["bs"], blk0["ss"], blk0["ts"])

    folded = [(fold(b_["w1"], b_["b1"], b_["s1"], b_["t1"]),
               fold(b_["w2"], b_["b2"], b_["s2"], b_["t2"]))
              for b_ in params["blocks"][1:]]
    w1s = jnp.stack([f[0][0] for f in folded])             # (3, 64, 64)
    b1s = jnp.stack([f[0][1] for f in folded])             # (3, 1, 64)
    w2s = jnp.stack([f[1][0] for f in folded])             # (3, 64, 64)
    b2s = jnp.stack([f[1][1] for f in folded])             # (3, 1, 64)

    # Stack the 4 LSTM gate weights along the output (lane) dim -> 128 lanes.
    wih_stack = jnp.transpose(params["wih"], (1, 0, 2)).reshape(LSTM_H, GATES)   # (32, 128)
    whh_stack = jnp.transpose(params["whh"], (1, 0, 2)).reshape(LSTM_H, GATES)   # (32, 128)
    b_stack = jnp.transpose(params["b_lstm"], (1, 0, 2)).reshape(1, GATES)       # (1, 128)

    # Fold fc_to_lstm into the LSTM input projection for all 8 timesteps.
    wcomp = jnp.einsum("hts,sg->htg",
                       params["w_fc"].reshape(HIDDEN, SEQ, LSTM_H),
                       wih_stack).reshape(HIDDEN, SEQ * GATES)                   # (64, 1024)
    bcomp = (params["b_fc"].reshape(SEQ, LSTM_H) @ wih_stack
             + b_stack).reshape(1, SEQ * GATES)                                  # (1, 1024)

    # Heads: softmax over a size-1 axis is identically 1, so
    # out = value @ Wfv + var @ Wfr + bf  ==  hh @ W_head + b_head.
    whead = params["wv"] @ params["wfv"] + params["wr"] @ params["wfr"]          # (32, 16)
    bhead = (params["bv"] @ params["wfv"] + params["br"] @ params["wfr"]
             + params["bf"])                                                     # (1, 16)

    args = (xp, w1a, b1a, w2a, b2a, wsa, bsa, w1s, b1s, w2s, b2s,
            wcomp, bcomp, whh_stack, whead, bhead)
    out_p = pl.pallas_call(
        fused_forward_kernel,
        out_shape=jax.ShapeDtypeStruct((PAD_B, OUT), jnp.float32),
        in_specs=[_vmem() for _ in args],
        out_specs=_vmem(),
        compiler_params=pltpu.CompilerParams(vmem_limit_bytes=8 * 1024 * 1024),
    )(*args)
    # TODO(synk): for real batch sizes add a batch grid axis with
    # dimension_semantics=("parallel",) so v7x's second TensorCore is used.
    return out_p[:B]


# ---------------------------------------------------------------------------
# Deterministic parameter init (synthetic; mirrors module __init__ shapes)
# ---------------------------------------------------------------------------
def init_params(key):
    keys = iter(jax.random.split(key, 64))

    def lin(fan_in, fan_out):
        w = jax.random.normal(next(keys), (fan_in, fan_out), jnp.float32) / float(fan_in) ** 0.5
        b = 0.01 * jax.random.normal(next(keys), (1, fan_out), jnp.float32)
        return w, b

    def bn_fold(n):
        gamma = 1.0 + 0.1 * jax.random.normal(next(keys), (1, n), jnp.float32)
        beta = 0.1 * jax.random.normal(next(keys), (1, n), jnp.float32)
        mean = jnp.zeros((1, n), jnp.float32)   # fresh running stats (eval mode)
        var = jnp.ones((1, n), jnp.float32)
        scale = gamma / jnp.sqrt(var + BN_EPS)
        shift = beta - mean * scale
        return scale, shift

    blocks = []
    flat = SEQ * IN_SIZE
    for i in range(NUM_BLOCKS):
        fin = flat if i == 0 else HIDDEN
        w1, b1 = lin(fin, HIDDEN)
        s1, t1 = bn_fold(HIDDEN)
        w2, b2 = lin(HIDDEN, HIDDEN)
        s2, t2 = bn_fold(HIDDEN)
        blk = dict(w1=w1, b1=b1, s1=s1, t1=t1, w2=w2, b2=b2, s2=s2, t2=t2)
        if fin != HIDDEN:                        # projection shortcut (Linear + BN)
            ws, bs = lin(fin, HIDDEN)
            ss, ts = bn_fold(HIDDEN)
            blk.update(ws=ws, bs=bs, ss=ss, ts=ts)
        blocks.append(blk)

    w_fc, b_fc = lin(HIDDEN, LSTM_H * SEQ)

    k = 1.0 / float(LSTM_H) ** 0.5
    wih = k * jax.random.normal(next(keys), (4, LSTM_H, LSTM_H), jnp.float32)
    whh = k * jax.random.normal(next(keys), (4, LSTM_H, LSTM_H), jnp.float32)
    b_ih = k * jax.random.normal(next(keys), (4, 1, LSTM_H), jnp.float32)
    b_hh = k * jax.random.normal(next(keys), (4, 1, LSTM_H), jnp.float32)
    b_lstm = b_ih + b_hh

    wv, bv = lin(LSTM_H, OUT)
    wr, br = lin(LSTM_H, OUT)
    # Attention: Linear(2*OUT, 1, bias=False), stored split per half (dead at eval:
    # softmax over the size-1 sequence axis is identically 1).
    wa = jax.random.normal(next(keys), (1, 2 * OUT), jnp.float32) / float(2 * OUT) ** 0.5
    wav, war = wa[:, :OUT], wa[:, OUT:]
    # fusion: Linear(2*OUT, OUT), stored split per half.
    wf_full, bf = lin(2 * OUT, OUT)
    wfv, wfr = wf_full[:OUT], wf_full[OUT:]

    return dict(blocks=blocks, w_fc=w_fc, b_fc=b_fc,
                wih=wih, whh=whh, b_lstm=b_lstm,
                wv=wv, bv=bv, wr=wr, br=br,
                wav=wav, war=war, wfv=wfv, wfr=wfr, bf=bf)


# ---------------------------------------------------------------------------
# Pure-JAX reference (literal transcription of the PyTorch forward, eval mode)
# ---------------------------------------------------------------------------
def reference_forward(x, params):
    B = x.shape[0]
    h = x.reshape(B, -1)
    for blk in params["blocks"]:
        y = h @ blk["w1"] + blk["b1"]
        y = y * blk["s1"] + blk["t1"]
        y = _elu(y)
        y = y @ blk["w2"] + blk["b2"]
        y = y * blk["s2"] + blk["t2"]
        sc = (h @ blk["ws"] + blk["bs"]) * blk["ss"] + blk["ts"] if "ws" in blk else h
        h = _elu(y + sc)
    mapped = h @ params["w_fc"] + params["b_fc"]
    seq = mapped.reshape(B, SEQ, LSTM_H)
    hh = jnp.zeros((B, LSTM_H), jnp.float32)
    cc = jnp.zeros((B, LSTM_H), jnp.float32)
    for t in range(SEQ):
        xt = seq[:, t, :]
        g = [xt @ params["wih"][k] + hh @ params["whh"][k] + params["b_lstm"][k]
             for k in range(4)]
        i, f = jax.nn.sigmoid(g[0]), jax.nn.sigmoid(g[1])
        gg, o = jnp.tanh(g[2]), jax.nn.sigmoid(g[3])
        cc = f * cc + i * gg
        hh = o * jnp.tanh(cc)
    value = hh @ params["wv"] + params["bv"]
    var = hh @ params["wr"] + params["br"]
    combined = jnp.concatenate([value, var], axis=-1)[:, None, :]        # (B,1,2O)
    w_att = jnp.concatenate([params["wav"], params["war"]], axis=1).T    # (2O,1)
    scores = combined @ w_att                                            # (B,1,1)
    attn = jax.nn.softmax(scores, axis=1)
    ctx = jnp.sum(attn * combined, axis=1)                               # (B,2O)
    wf = jnp.concatenate([params["wfv"], params["wfr"]], axis=0)         # (2O,O)
    return ctx @ wf + params["bf"]


if __name__ == "__main__":
    key = jax.random.PRNGKey(0)
    pkey, xkey = jax.random.split(key)
    params = init_params(pkey)
    x = jax.random.normal(xkey, (BATCH, SEQ, IN_SIZE), jnp.float32)

    out = forward(x, params)
    out = jax.block_until_ready(out)
    assert out.shape == (BATCH, OUT)

    ref = reference_forward(x, params)
    err = float(jnp.max(jnp.abs(out - ref)))
    if err > 5e-2:
        raise AssertionError(f"mismatch vs reference: max abs err {err}")

    print("KERNEL_OK")
</pallas_src>

<mosaic_0001>
module attributes {stable_mosaic.version = 11 : i64} {
  func.func @fused_forward_kernel(%arg0: memref<8x32xf32, #tpu.memory_space<vmem>>, %arg1: memref<32x64xf32, #tpu.memory_space<vmem>>, %arg2: memref<1x64xf32, #tpu.memory_space<vmem>>, %arg3: memref<64x64xf32, #tpu.memory_space<vmem>>, %arg4: memref<1x64xf32, #tpu.memory_space<vmem>>, %arg5: memref<32x64xf32, #tpu.memory_space<vmem>>, %arg6: memref<1x64xf32, #tpu.memory_space<vmem>>, %arg7: memref<3x64x64xf32, #tpu.memory_space<vmem>>, %arg8: memref<3x1x64xf32, #tpu.memory_space<vmem>>, %arg9: memref<3x64x64xf32, #tpu.memory_space<vmem>>, %arg10: memref<3x1x64xf32, #tpu.memory_space<vmem>>, %arg11: memref<64x1024xf32, #tpu.memory_space<vmem>>, %arg12: memref<1x1024xf32, #tpu.memory_space<vmem>>, %arg13: memref<32x128xf32, #tpu.memory_space<vmem>>, %arg14: memref<32x16xf32, #tpu.memory_space<vmem>>, %arg15: memref<1x16xf32, #tpu.memory_space<vmem>>, %arg16: memref<8x16xf32, #tpu.memory_space<vmem>>) attributes {dimension_semantics = [], scalar_prefetch = 0 : i64, scratch_operands = 0 : i64, tpu.core_type = #tpu.core_type<tc>} {
    %c0 = arith.constant 0 : index
    %c0_0 = arith.constant 0 : index
    %0 = vector.load %arg0[%c0, %c0_0] : memref<8x32xf32, #tpu.memory_space<vmem>>, vector<8x32xf32>
    %c0_1 = arith.constant 0 : index
    %c0_2 = arith.constant 0 : index
    %1 = vector.load %arg1[%c0_1, %c0_2] : memref<32x64xf32, #tpu.memory_space<vmem>>, vector<32x64xf32>
    %cst = arith.constant dense<0.000000e+00> : vector<8x64xf32>
    %2 = tpu.matmul %0, %1, %cst {dimension_numbers = #tpu.dot_dimension_numbers<[1], [0], [0], [1], [0, 0, 1, 1], [], []>} : vector<8x32xf32>, vector<32x64xf32>, vector<8x64xf32> -> vector<8x64xf32>
    %c0_3 = arith.constant 0 : index
    %c0_4 = arith.constant 0 : index
    %3 = vector.load %arg2[%c0_3, %c0_4] : memref<1x64xf32, #tpu.memory_space<vmem>>, vector<1x64xf32>
    %4 = vector.broadcast %3 : vector<1x64xf32> to vector<8x64xf32>
    %5 = arith.addf %2, %4 : vector<8x64xf32>
    %cst_5 = arith.constant 0.000000e+00 : f32
    %6 = vector.broadcast %cst_5 : f32 to vector<8x64xf32>
    %7 = arith.cmpf ogt, %5, %6 : vector<8x64xf32>
    %cst_6 = arith.constant 0.000000e+00 : f32
    %8 = vector.broadcast %cst_6 : f32 to vector<8x64xf32>
    %9 = arith.minimumf %5, %8 : vector<8x64xf32>
    %10 = math.exp %9 : vector<8x64xf32>
    %cst_7 = arith.constant 1.000000e+00 : f32
    %11 = vector.broadcast %cst_7 : f32 to vector<8x64xf32>
    %12 = arith.subf %10, %11 : vector<8x64xf32>
    %13 = arith.select %7, %5, %12 : vector<8x64xi1>, vector<8x64xf32>
    %c0_8 = arith.constant 0 : index
    %c0_9 = arith.constant 0 : index
    %14 = vector.load %arg3[%c0_8, %c0_9] : memref<64x64xf32, #tpu.memory_space<vmem>>, vector<64x64xf32>
    %cst_10 = arith.constant dense<0.000000e+00> : vector<8x64xf32>
    %15 = tpu.matmul %13, %14, %cst_10 {dimension_numbers = #tpu.dot_dimension_numbers<[1], [0], [0], [1], [0, 0, 1, 1], [], []>} : vector<8x64xf32>, vector<64x64xf32>, vector<8x64xf32> -> vector<8x64xf32>
    %c0_11 = arith.constant 0 : index
    %c0_12 = arith.constant 0 : index
    %16 = vector.load %arg4[%c0_11, %c0_12] : memref<1x64xf32, #tpu.memory_space<vmem>>, vector<1x64xf32>
    %17 = vector.broadcast %16 : vector<1x64xf32> to vector<8x64xf32>
    %18 = arith.addf %15, %17 : vector<8x64xf32>
    %c0_13 = arith.constant 0 : index
    %c0_14 = arith.constant 0 : index
    %19 = vector.load %arg5[%c0_13, %c0_14] : memref<32x64xf32, #tpu.memory_space<vmem>>, vector<32x64xf32>
    %cst_15 = arith.constant dense<0.000000e+00> : vector<8x64xf32>
    %20 = tpu.matmul %0, %19, %cst_15 {dimension_numbers = #tpu.dot_dimension_numbers<[1], [0], [0], [1], [0, 0, 1, 1], [], []>} : vector<8x32xf32>, vector<32x64xf32>, vector<8x64xf32> -> vector<8x64xf32>
    %c0_16 = arith.constant 0 : index
    %c0_17 = arith.constant 0 : index
    %21 = vector.load %arg6[%c0_16, %c0_17] : memref<1x64xf32, #tpu.memory_space<vmem>>, vector<1x64xf32>
    %22 = vector.broadcast %21 : vector<1x64xf32> to vector<8x64xf32>
    %23 = arith.addf %20, %22 : vector<8x64xf32>
    %24 = arith.addf %18, %23 : vector<8x64xf32>
    %cst_18 = arith.constant 0.000000e+00 : f32
    %25 = vector.broadcast %cst_18 : f32 to vector<8x64xf32>
    %26 = arith.cmpf ogt, %24, %25 : vector<8x64xf32>
    %cst_19 = arith.constant 0.000000e+00 : f32
    %27 = vector.broadcast %cst_19 : f32 to vector<8x64xf32>
    %28 = arith.minimumf %24, %27 : vector<8x64xf32>
    %29 = math.exp %28 : vector<8x64xf32>
    %cst_20 = arith.constant 1.000000e+00 : f32
    %30 = vector.broadcast %cst_20 : f32 to vector<8x64xf32>
    %31 = arith.subf %29, %30 : vector<8x64xf32>
    %32 = arith.select %26, %24, %31 : vector<8x64xi1>, vector<8x64xf32>
    %c0_21 = arith.constant 0 : index
    %c0_22 = arith.constant 0 : index
    %c0_23 = arith.constant 0 : index
    %33 = vector.load %arg7[%c0_21, %c0_22, %c0_23] : memref<3x64x64xf32, #tpu.memory_space<vmem>>, vector<1x64x64xf32>
    %34 = vector.shape_cast %33 : vector<1x64x64xf32> to vector<64x64xf32>
    %cst_24 = arith.constant dense<0.000000e+00> : vector<8x64xf32>
    %35 = tpu.matmul %32, %34, %cst_24 {dimension_numbers = #tpu.dot_dimension_numbers<[1], [0], [0], [1], [0, 0, 1, 1], [], []>} : vector<8x64xf32>, vector<64x64xf32>, vector<8x64xf32> -> vector<8x64xf32>
    %c0_25 = arith.constant 0 : index
    %c0_26 = arith.constant 0 : index
    %c0_27 = arith.constant 0 : index
    %36 = vector.load %arg8[%c0_25, %c0_26, %c0_27] : memref<3x1x64xf32, #tpu.memory_space<vmem>>, vector<1x1x64xf32>
    %37 = vector.shape_cast %36 : vector<1x1x64xf32> to vector<1x64xf32>
    %38 = vector.broadcast %37 : vector<1x64xf32> to vector<8x64xf32>
    %39 = arith.addf %35, %38 : vector<8x64xf32>
    %cst_28 = arith.constant 0.000000e+00 : f32
    %40 = vector.broadcast %cst_28 : f32 to vector<8x64xf32>
    %41 = arith.cmpf ogt, %39, %40 : vector<8x64xf32>
    %cst_29 = arith.constant 0.000000e+00 : f32
    %42 = vector.broadcast %cst_29 : f32 to vector<8x64xf32>
    %43 = arith.minimumf %39, %42 : vector<8x64xf32>
    %44 = math.exp %43 : vector<8x64xf32>
    %cst_30 = arith.constant 1.000000e+00 : f32
    %45 = vector.broadcast %cst_30 : f32 to vector<8x64xf32>
    %46 = arith.subf %44, %45 : vector<8x64xf32>
    %47 = arith.select %41, %39, %46 : vector<8x64xi1>, vector<8x64xf32>
    %c0_31 = arith.constant 0 : index
    %c0_32 = arith.constant 0 : index
    %c0_33 = arith.constant 0 : index
    %48 = vector.load %arg9[%c0_31, %c0_32, %c0_33] : memref<3x64x64xf32, #tpu.memory_space<vmem>>, vector<1x64x64xf32>
    %49 = vector.shape_cast %48 : vector<1x64x64xf32> to vector<64x64xf32>
    %cst_34 = arith.constant dense<0.000000e+00> : vector<8x64xf32>
    %50 = tpu.matmul %47, %49, %cst_34 {dimension_numbers = #tpu.dot_dimension_numbers<[1], [0], [0], [1], [0, 0, 1, 1], [], []>} : vector<8x64xf32>, vector<64x64xf32>, vector<8x64xf32> -> vector<8x64xf32>
    %c0_35 = arith.constant 0 : index
    %c0_36 = arith.constant 0 : index
    %c0_37 = arith.constant 0 : index
    %51 = vector.load %arg10[%c0_35, %c0_36, %c0_37] : memref<3x1x64xf32, #tpu.memory_space<vmem>>, vector<1x1x64xf32>
    %52 = vector.shape_cast %51 : vector<1x1x64xf32> to vector<1x64xf32>
    %53 = vector.broadcast %52 : vector<1x64xf32> to vector<8x64xf32>
    %54 = arith.addf %50, %53 : vector<8x64xf32>
    %55 = arith.addf %54, %32 : vector<8x64xf32>
    %cst_38 = arith.constant 0.000000e+00 : f32
    %56 = vector.broadcast %cst_38 : f32 to vector<8x64xf32>
    %57 = arith.cmpf ogt, %55, %56 : vector<8x64xf32>
    %cst_39 = arith.constant 0.000000e+00 : f32
    %58 = vector.broadcast %cst_39 : f32 to vector<8x64xf32>
    %59 = arith.minimumf %55, %58 : vector<8x64xf32>
    %60 = math.exp %59 : vector<8x64xf32>
    %cst_40 = arith.constant 1.000000e+00 : f32
    %61 = vector.broadcast %cst_40 : f32 to vector<8x64xf32>
    %62 = arith.subf %60, %61 : vector<8x64xf32>
    %63 = arith.select %57, %55, %62 : vector<8x64xi1>, vector<8x64xf32>
    %c1 = arith.constant 1 : index
    %c0_41 = arith.constant 0 : index
    %c0_42 = arith.constant 0 : index
    %64 = vector.load %arg7[%c1, %c0_41, %c0_42] : memref<3x64x64xf32, #tpu.memory_space<vmem>>, vector<1x64x64xf32>
    %65 = vector.shape_cast %64 : vector<1x64x64xf32> to vector<64x64xf32>
    %cst_43 = arith.constant dense<0.000000e+00> : vector<8x64xf32>
    %66 = tpu.matmul %63, %65, %cst_43 {dimension_numbers = #tpu.dot_dimension_numbers<[1], [0], [0], [1], [0, 0, 1, 1], [], []>} : vector<8x64xf32>, vector<64x64xf32>, vector<8x64xf32> -> vector<8x64xf32>
    %c1_44 = arith.constant 1 : index
    %c0_45 = arith.constant 0 : index
    %c0_46 = arith.constant 0 : index
    %67 = vector.load %arg8[%c1_44, %c0_45, %c0_46] : memref<3x1x64xf32, #tpu.memory_space<vmem>>, vector<1x1x64xf32>
    %68 = vector.shape_cast %67 : vector<1x1x64xf32> to vector<1x64xf32>
    %69 = vector.broadcast %68 : vector<1x64xf32> to vector<8x64xf32>
    %70 = arith.addf %66, %69 : vector<8x64xf32>
    %cst_47 = arith.constant 0.000000e+00 : f32
    %71 = vector.broadcast %cst_47 : f32 to vector<8x64xf32>
    %72 = arith.cmpf ogt, %70, %71 : vector<8x64xf32>
    %cst_48 = arith.constant 0.000000e+00 : f32
    %73 = vector.broadcast %cst_48 : f32 to vector<8x64xf32>
    %74 = arith.minimumf %70, %73 : vector<8x64xf32>
    %75 = math.exp %74 : vector<8x64xf32>
    %cst_49 = arith.constant 1.000000e+00 : f32
    %76 = vector.broadcast %cst_49 : f32 to vector<8x64xf32>
    %77 = arith.subf %75, %76 : vector<8x64xf32>
    %78 = arith.select %72, %70, %77 : vector<8x64xi1>, vector<8x64xf32>
    %c1_50 = arith.constant 1 : index
    %c0_51 = arith.constant 0 : index
    %c0_52 = arith.constant 0 : index
    %79 = vector.load %arg9[%c1_50, %c0_51, %c0_52] : memref<3x64x64xf32, #tpu.memory_space<vmem>>, vector<1x64x64xf32>
    %80 = vector.shape_cast %79 : vector<1x64x64xf32> to vector<64x64xf32>
    %cst_53 = arith.constant dense<0.000000e+00> : vector<8x64xf32>
    %81 = tpu.matmul %78, %80, %cst_53 {dimension_numbers = #tpu.dot_dimension_numbers<[1], [0], [0], [1], [0, 0, 1, 1], [], []>} : vector<8x64xf32>, vector<64x64xf32>, vector<8x64xf32> -> vector<8x64xf32>
    %c1_54 = arith.constant 1 : index
    %c0_55 = arith.constant 0 : index
    %c0_56 = arith.constant 0 : index
    %82 = vector.load %arg10[%c1_54, %c0_55, %c0_56] : memref<3x1x64xf32, #tpu.memory_space<vmem>>, vector<1x1x64xf32>
    %83 = vector.shape_cast %82 : vector<1x1x64xf32> to vector<1x64xf32>
    %84 = vector.broadcast %83 : vector<1x64xf32> to vector<8x64xf32>
    %85 = arith.addf %81, %84 : vector<8x64xf32>
    %86 = arith.addf %85, %63 : vector<8x64xf32>
    %cst_57 = arith.constant 0.000000e+00 : f32
    %87 = vector.broadcast %cst_57 : f32 to vector<8x64xf32>
    %88 = arith.cmpf ogt, %86, %87 : vector<8x64xf32>
    %cst_58 = arith.constant 0.000000e+00 : f32
    %89 = vector.broadcast %cst_58 : f32 to vector<8x64xf32>
    %90 = arith.minimumf %86, %89 : vector<8x64xf32>
    %91 = math.exp %90 : vector<8x64xf32>
    %cst_59 = arith.constant 1.000000e+00 : f32
    %92 = vector.broadcast %cst_59 : f32 to vector<8x64xf32>
    %93 = arith.subf %91, %92 : vector<8x64xf32>
    %94 = arith.select %88, %86, %93 : vector<8x64xi1>, vector<8x64xf32>
    %c2 = arith.constant 2 : index
    %c0_60 = arith.constant 0 : index
    %c0_61 = arith.constant 0 : index
    %95 = vector.load %arg7[%c2, %c0_60, %c0_61] : memref<3x64x64xf32, #tpu.memory_space<vmem>>, vector<1x64x64xf32>
    %96 = vector.shape_cast %95 : vector<1x64x64xf32> to vector<64x64xf32>
    %cst_62 = arith.constant dense<0.000000e+00> : vector<8x64xf32>
    %97 = tpu.matmul %94, %96, %cst_62 {dimension_numbers = #tpu.dot_dimension_numbers<[1], [0], [0], [1], [0, 0, 1, 1], [], []>} : vector<8x64xf32>, vector<64x64xf32>, vector<8x64xf32> -> vector<8x64xf32>
    %c2_63 = arith.constant 2 : index
    %c0_64 = arith.constant 0 : index
    %c0_65 = arith.constant 0 : index
    %98 = vector.load %arg8[%c2_63, %c0_64, %c0_65] : memref<3x1x64xf32, #tpu.memory_space<vmem>>, vector<1x1x64xf32>
    %99 = vector.shape_cast %98 : vector<1x1x64xf32> to vector<1x64xf32>
    %100 = vector.broadcast %99 : vector<1x64xf32> to vector<8x64xf32>
    %101 = arith.addf %97, %100 : vector<8x64xf32>
    %cst_66 = arith.constant 0.000000e+00 : f32
    %102 = vector.broadcast %cst_66 : f32 to vector<8x64xf32>
    %103 = arith.cmpf ogt, %101, %102 : vector<8x64xf32>
    %cst_67 = arith.constant 0.000000e+00 : f32
    %104 = vector.broadcast %cst_67 : f32 to vector<8x64xf32>
    %105 = arith.minimumf %101, %104 : vector<8x64xf32>
    %106 = math.exp %105 : vector<8x64xf32>
    %cst_68 = arith.constant 1.000000e+00 : f32
    %107 = vector.broadcast %cst_68 : f32 to vector<8x64xf32>
    %108 = arith.subf %106, %107 : vector<8x64xf32>
    %109 = arith.select %103, %101, %108 : vector<8x64xi1>, vector<8x64xf32>
    %c2_69 = arith.constant 2 : index
    %c0_70 = arith.constant 0 : index
    %c0_71 = arith.constant 0 : index
    %110 = vector.load %arg9[%c2_69, %c0_70, %c0_71] : memref<3x64x64xf32, #tpu.memory_space<vmem>>, vector<1x64x64xf32>
    %111 = vector.shape_cast %110 : vector<1x64x64xf32> to vector<64x64xf32>
    %cst_72 = arith.constant dense<0.000000e+00> : vector<8x64xf32>
    %112 = tpu.matmul %109, %111, %cst_72 {dimension_numbers = #tpu.dot_dimension_numbers<[1], [0], [0], [1], [0, 0, 1, 1], [], []>} : vector<8x64xf32>, vector<64x64xf32>, vector<8x64xf32> -> vector<8x64xf32>
    %c2_73 = arith.constant 2 : index
    %c0_74 = arith.constant 0 : index
    %c0_75 = arith.constant 0 : index
    %113 = vector.load %arg10[%c2_73, %c0_74, %c0_75] : memref<3x1x64xf32, #tpu.memory_space<vmem>>, vector<1x1x64xf32>
    %114 = vector.shape_cast %113 : vector<1x1x64xf32> to vector<1x64xf32>
    %115 = vector.broadcast %114 : vector<1x64xf32> to vector<8x64xf32>
    %116 = arith.addf %112, %115 : vector<8x64xf32>
    %117 = arith.addf %116, %94 : vector<8x64xf32>
    %cst_76 = arith.constant 0.000000e+00 : f32
    %118 = vector.broadcast %cst_76 : f32 to vector<8x64xf32>
    %119 = arith.cmpf ogt, %117, %118 : vector<8x64xf32>
    %cst_77 = arith.constant 0.000000e+00 : f32
    %120 = vector.broadcast %cst_77 : f32 to vector<8x64xf32>
    %121 = arith.minimumf %117, %120 : vector<8x64xf32>
    %122 = math.exp %121 : vector<8x64xf32>
    %cst_78 = arith.constant 1.000000e+00 : f32
    %123 = vector.broadcast %cst_78 : f32 to vector<8x64xf32>
    %124 = arith.subf %122, %123 : vector<8x64xf32>
    %125 = arith.select %119, %117, %124 : vector<8x64xi1>, vector<8x64xf32>
    %c0_79 = arith.constant 0 : index
    %c0_80 = arith.constant 0 : index
    %126 = vector.load %arg11[%c0_79, %c0_80] : memref<64x1024xf32, #tpu.memory_space<vmem>>, vector<64x1024xf32>
    %cst_81 = arith.constant dense<0.000000e+00> : vector<8x1024xf32>
    %127 = tpu.matmul %125, %126, %cst_81 {dimension_numbers = #tpu.dot_dimension_numbers<[1], [0], [0], [1], [0, 0, 1, 1], [], []>} : vector<8x64xf32>, vector<64x1024xf32>, vector<8x1024xf32> -> vector<8x1024xf32>
    %c0_82 = arith.constant 0 : index
    %c0_83 = arith.constant 0 : index
    %128 = vector.load %arg12[%c0_82, %c0_83] : memref<1x1024xf32, #tpu.memory_space<vmem>>, vector<1x1024xf32>
    %129 = vector.broadcast %128 : vector<1x1024xf32> to vector<8x1024xf32>
    %130 = arith.addf %127, %129 : vector<8x1024xf32>
    %c0_84 = arith.constant 0 : index
    %c0_85 = arith.constant 0 : index
    %131 = vector.load %arg13[%c0_84, %c0_85] : memref<32x128xf32, #tpu.memory_space<vmem>>, vector<32x128xf32>
    %cst_86 = arith.constant 0.000000e+00 : f32
    %132 = vector.broadcast %cst_86 : f32 to vector<8x32xf32>
    %cst_87 = arith.constant 0.000000e+00 : f32
    %133 = vector.broadcast %cst_87 : f32 to vector<8x32xf32>
    %134 = vector.extract_strided_slice %130 {offsets = [0, 0], sizes = [8, 128], strides = [1, 1]} : vector<8x1024xf32> to vector<8x128xf32>
    %cst_88 = arith.constant dense<0.000000e+00> : vector<8x128xf32>
    %135 = tpu.matmul %132, %131, %cst_88 {dimension_numbers = #tpu.dot_dimension_numbers<[1], [0], [0], [1], [0, 0, 1, 1], [], []>} : vector<8x32xf32>, vector<32x128xf32>, vector<8x128xf32> -> vector<8x128xf32>
    %136 = arith.addf %134, %135 : vector<8x128xf32>
    %137 = vector.extract_strided_slice %136 {offsets = [0, 0], sizes = [8, 32], strides = [1, 1]} : vector<8x128xf32> to vector<8x32xf32>
    %138 = arith.negf %137 : vector<8x32xf32>
    %139 = math.exp %138 : vector<8x32xf32>
    %cst_89 = arith.constant 1.000000e+00 : f32
    %140 = vector.broadcast %cst_89 : f32 to vector<8x32xf32>
    %141 = arith.addf %140, %139 : vector<8x32xf32>
    %142 = arith.divf %140, %141 : vector<8x32xf32>
    %143 = vector.extract_strided_slice %136 {offsets = [0, 32], sizes = [8, 32], strides = [1, 1]} : vector<8x128xf32> to vector<8x32xf32>
    %144 = arith.negf %143 : vector<8x32xf32>
    %145 = math.exp %144 : vector<8x32xf32>
    %cst_90 = arith.constant 1.000000e+00 : f32
    %146 = vector.broadcast %cst_90 : f32 to vector<8x32xf32>
    %147 = arith.addf %146, %145 : vector<8x32xf32>
    %148 = arith.divf %146, %147 : vector<8x32xf32>
    %149 = vector.extract_strided_slice %136 {offsets = [0, 64], sizes = [8, 32], strides = [1, 1]} : vector<8x128xf32> to vector<8x32xf32>
    %150 = math.tanh %149 : vector<8x32xf32>
    %151 = vector.extract_strided_slice %136 {offsets = [0, 96], sizes = [8, 32], strides = [1, 1]} : vector<8x128xf32> to vector<8x32xf32>
    %152 = arith.negf %151 : vector<8x32xf32>
    %153 = math.exp %152 : vector<8x32xf32>
    %cst_91 = arith.constant 1.000000e+00 : f32
    %154 = vector.broadcast %cst_91 : f32 to vector<8x32xf32>
    %155 = arith.addf %154, %153 : vector<8x32xf32>
    %156 = arith.divf %154, %155 : vector<8x32xf32>
    %157 = arith.mulf %148, %133 : vector<8x32xf32>
    %158 = arith.mulf %142, %150 : vector<8x32xf32>
    %159 = arith.addf %157, %158 : vector<8x32xf32>
    %160 = math.tanh %159 : vector<8x32xf32>
    %161 = arith.mulf %156, %160 : vector<8x32xf32>
    %162 = vector.extract_strided_slice %130 {offsets = [0, 128], sizes = [8, 128], strides = [1, 1]} : vector<8x1024xf32> to vector<8x128xf32>
    %cst_92 = arith.constant dense<0.000000e+00> : vector<8x128xf32>
    %163 = tpu.matmul %161, %131, %cst_92 {dimension_numbers = #tpu.dot_dimension_numbers<[1], [0], [0], [1], [0, 0, 1, 1], [], []>} : vector<8x32xf32>, vector<32x128xf32>, vector<8x128xf32> -> vector<8x128xf32>
    %164 = arith.addf %162, %163 : vector<8x128xf32>
    %165 = vector.extract_strided_slice %164 {offsets = [0, 0], sizes = [8, 32], strides = [1, 1]} : vector<8x128xf32> to vector<8x32xf32>
    %166 = arith.negf %165 : vector<8x32xf32>
    %167 = math.exp %166 : vector<8x32xf32>
    %cst_93 = arith.constant 1.000000e+00 : f32
    %168 = vector.broadcast %cst_93 : f32 to vector<8x32xf32>
    %169 = arith.addf %168, %167 : vector<8x32xf32>
    %170 = arith.divf %168, %169 : vector<8x32xf32>
    %171 = vector.extract_strided_slice %164 {offsets = [0, 32], sizes = [8, 32], strides = [1, 1]} : vector<8x128xf32> to vector<8x32xf32>
    %172 = arith.negf %171 : vector<8x32xf32>
    %173 = math.exp %172 : vector<8x32xf32>
    %cst_94 = arith.constant 1.000000e+00 : f32
    %174 = vector.broadcast %cst_94 : f32 to vector<8x32xf32>
    %175 = arith.addf %174, %173 : vector<8x32xf32>
    %176 = arith.divf %174, %175 : vector<8x32xf32>
    %177 = vector.extract_strided_slice %164 {offsets = [0, 64], sizes = [8, 32], strides = [1, 1]} : vector<8x128xf32> to vector<8x32xf32>
    %178 = math.tanh %177 : vector<8x32xf32>
    %179 = vector.extract_strided_slice %164 {offsets = [0, 96], sizes = [8, 32], strides = [1, 1]} : vector<8x128xf32> to vector<8x32xf32>
    %180 = arith.negf %179 : vector<8x32xf32>
    %181 = math.exp %180 : vector<8x32xf32>
    %cst_95 = arith.constant 1.000000e+00 : f32
    %182 = vector.broadcast %cst_95 : f32 to vector<8x32xf32>
    %183 = arith.addf %182, %181 : vector<8x32xf32>
    %184 = arith.divf %182, %183 : vector<8x32xf32>
    %185 = arith.mulf %176, %159 : vector<8x32xf32>
    %186 = arith.mulf %170, %178 : vector<8x32xf32>
    %187 = arith.addf %185, %186 : vector<8x32xf32>
    %188 = math.tanh %187 : vector<8x32xf32>
    %189 = arith.mulf %184, %188 : vector<8x32xf32>
    %190 = vector.extract_strided_slice %130 {offsets = [0, 256], sizes = [8, 128], strides = [1, 1]} : vector<8x1024xf32> to vector<8x128xf32>
    %cst_96 = arith.constant dense<0.000000e+00> : vector<8x128xf32>
    %191 = tpu.matmul %189, %131, %cst_96 {dimension_numbers = #tpu.dot_dimension_numbers<[1], [0], [0], [1], [0, 0, 1, 1], [], []>} : vector<8x32xf32>, vector<32x128xf32>, vector<8x128xf32> -> vector<8x128xf32>
    %192 = arith.addf %190, %191 : vector<8x128xf32>
    %193 = vector.extract_strided_slice %192 {offsets = [0, 0], sizes = [8, 32], strides = [1, 1]} : vector<8x128xf32> to vector<8x32xf32>
    %194 = arith.negf %193 : vector<8x32xf32>
    %195 = math.exp %194 : vector<8x32xf32>
    %cst_97 = arith.constant 1.000000e+00 : f32
    %196 = vector.broadcast %cst_97 : f32 to vector<8x32xf32>
    %197 = arith.addf %196, %195 : vector<8x32xf32>
    %198 = arith.divf %196, %197 : vector<8x32xf32>
    %199 = vector.extract_strided_slice %192 {offsets = [0, 32], sizes = [8, 32], strides = [1, 1]} : vector<8x128xf32> to vector<8x32xf32>
    %200 = arith.negf %199 : vector<8x32xf32>
    %201 = math.exp %200 : vector<8x32xf32>
    %cst_98 = arith.constant 1.000000e+00 : f32
    %202 = vector.broadcast %cst_98 : f32 to vector<8x32xf32>
    %203 = arith.addf %202, %201 : vector<8x32xf32>
    %204 = arith.divf %202, %203 : vector<8x32xf32>
    %205 = vector.extract_strided_slice %192 {offsets = [0, 64], sizes = [8, 32], strides = [1, 1]} : vector<8x128xf32> to vector<8x32xf32>
    %206 = math.tanh %205 : vector<8x32xf32>
    %207 = vector.extract_strided_slice %192 {offsets = [0, 96], sizes = [8, 32], strides = [1, 1]} : vector<8x128xf32> to vector<8x32xf32>
    %208 = arith.negf %207 : vector<8x32xf32>
    %209 = math.exp %208 : vector<8x32xf32>
    %cst_99 = arith.constant 1.000000e+00 : f32
    %210 = vector.broadcast %cst_99 : f32 to vector<8x32xf32>
    %211 = arith.addf %210, %209 : vector<8x32xf32>
    %212 = arith.divf %210, %211 : vector<8x32xf32>
    %213 = arith.mulf %204, %187 : vector<8x32xf32>
    %214 = arith.mulf %198, %206 : vector<8x32xf32>
    %215 = arith.addf %213, %214 : vector<8x32xf32>
    %216 = math.tanh %215 : vector<8x32xf32>
    %217 = arith.mulf %212, %216 : vector<8x32xf32>
    %218 = vector.extract_strided_slice %130 {offsets = [0, 384], sizes = [8, 128], strides = [1, 1]} : vector<8x1024xf32> to vector<8x128xf32>
    %cst_100 = arith.constant dense<0.000000e+00> : vector<8x128xf32>
    %219 = tpu.matmul %217, %131, %cst_100 {dimension_numbers = #tpu.dot_dimension_numbers<[1], [0], [0], [1], [0, 0, 1, 1], [], []>} : vector<8x32xf32>, vector<32x128xf32>, vector<8x128xf32> -> vector<8x128xf32>
    %220 = arith.addf %218, %219 : vector<8x128xf32>
    %221 = vector.extract_strided_slice %220 {offsets = [0, 0], sizes = [8, 32], strides = [1, 1]} : vector<8x128xf32> to vector<8x32xf32>
    %222 = arith.negf %221 : vector<8x32xf32>
    %223 = math.exp %222 : vector<8x32xf32>
    %cst_101 = arith.constant 1.000000e+00 : f32
    %224 = vector.broadcast %cst_101 : f32 to vector<8x32xf32>
    %225 = arith.addf %224, %223 : vector<8x32xf32>
    %226 = arith.divf %224, %225 : vector<8x32xf32>
    %227 = vector.extract_strided_slice %220 {offsets = [0, 32], sizes = [8, 32], strides = [1, 1]} : vector<8x128xf32> to vector<8x32xf32>
    %228 = arith.negf %227 : vector<8x32xf32>
    %229 = math.exp %228 : vector<8x32xf32>
    %cst_102 = arith.constant 1.000000e+00 : f32
    %230 = vector.broadcast %cst_102 : f32 to vector<8x32xf32>
    %231 = arith.addf %230, %229 : vector<8x32xf32>
    %232 = arith.divf %230, %231 : vector<8x32xf32>
    %233 = vector.extract_strided_slice %220 {offsets = [0, 64], sizes = [8, 32], strides = [1, 1]} : vector<8x128xf32> to vector<8x32xf32>
    %234 = math.tanh %233 : vector<8x32xf32>
    %235 = vector.extract_strided_slice %220 {offsets = [0, 96], sizes = [8, 32], strides = [1, 1]} : vector<8x128xf32> to vector<8x32xf32>
    %236 = arith.negf %235 : vector<8x32xf32>
    %237 = math.exp %236 : vector<8x32xf32>
    %cst_103 = arith.constant 1.000000e+00 : f32
    %238 = vector.broadcast %cst_103 : f32 to vector<8x32xf32>
    %239 = arith.addf %238, %237 : vector<8x32xf32>
    %240 = arith.divf %238, %239 : vector<8x32xf32>
    %241 = arith.mulf %232, %215 : vector<8x32xf32>
    %242 = arith.mulf %226, %234 : vector<8x32xf32>
    %243 = arith.addf %241, %242 : vector<8x32xf32>
    %244 = math.tanh %243 : vector<8x32xf32>
    %245 = arith.mulf %240, %244 : vector<8x32xf32>
    %246 = vector.extract_strided_slice %130 {offsets = [0, 512], sizes = [8, 128], strides = [1, 1]} : vector<8x1024xf32> to vector<8x128xf32>
    %cst_104 = arith.constant dense<0.000000e+00> : vector<8x128xf32>
    %247 = tpu.matmul %245, %131, %cst_104 {dimension_numbers = #tpu.dot_dimension_numbers<[1], [0], [0], [1], [0, 0, 1, 1], [], []>} : vector<8x32xf32>, vector<32x128xf32>, vector<8x128xf32> -> vector<8x128xf32>
    %248 = arith.addf %246, %247 : vector<8x128xf32>
    %249 = vector.extract_strided_slice %248 {offsets = [0, 0], sizes = [8, 32], strides = [1, 1]} : vector<8x128xf32> to vector<8x32xf32>
    %250 = arith.negf %249 : vector<8x32xf32>
    %251 = math.exp %250 : vector<8x32xf32>
    %cst_105 = arith.constant 1.000000e+00 : f32
    %252 = vector.broadcast %cst_105 : f32 to vector<8x32xf32>
    %253 = arith.addf %252, %251 : vector<8x32xf32>
    %254 = arith.divf %252, %253 : vector<8x32xf32>
    %255 = vector.extract_strided_slice %248 {offsets = [0, 32], sizes = [8, 32], strides = [1, 1]} : vector<8x128xf32> to vector<8x32xf32>
    %256 = arith.negf %255 : vector<8x32xf32>
    %257 = math.exp %256 : vector<8x32xf32>
    %cst_106 = arith.constant 1.000000e+00 : f32
    %258 = vector.broadcast %cst_106 : f32 to vector<8x32xf32>
    %259 = arith.addf %258, %257 : vector<8x32xf32>
    %260 = arith.divf %258, %259 : vector<8x32xf32>
    %261 = vector.extract_strided_slice %248 {offsets = [0, 64], sizes = [8, 32], strides = [1, 1]} : vector<8x128xf32> to vector<8x32xf32>
    %262 = math.tanh %261 : vector<8x32xf32>
    %263 = vector.extract_strided_slice %248 {offsets = [0, 96], sizes = [8, 32], strides = [1, 1]} : vector<8x128xf32> to vector<8x32xf32>
    %264 = arith.negf %263 : vector<8x32xf32>
    %265 = math.exp %264 : vector<8x32xf32>
    %cst_107 = arith.constant 1.000000e+00 : f32
    %266 = vector.broadcast %cst_107 : f32 to vector<8x32xf32>
    %267 = arith.addf %266, %265 : vector<8x32xf32>
    %268 = arith.divf %266, %267 : vector<8x32xf32>
    %269 = arith.mulf %260, %243 : vector<8x32xf32>
    %270 = arith.mulf %254, %262 : vector<8x32xf32>
    %271 = arith.addf %269, %270 : vector<8x32xf32>
    %272 = math.tanh %271 : vector<8x32xf32>
    %273 = arith.mulf %268, %272 : vector<8x32xf32>
    %274 = vector.extract_strided_slice %130 {offsets = [0, 640], sizes = [8, 128], strides = [1, 1]} : vector<8x1024xf32> to vector<8x128xf32>
    %cst_108 = arith.constant dense<0.000000e+00> : vector<8x128xf32>
    %275 = tpu.matmul %273, %131, %cst_108 {dimension_numbers = #tpu.dot_dimension_numbers<[1], [0], [0], [1], [0, 0, 1, 1], [], []>} : vector<8x32xf32>, vector<32x128xf32>, vector<8x128xf32> -> vector<8x128xf32>
    %276 = arith.addf %274, %275 : vector<8x128xf32>
    %277 = vector.extract_strided_slice %276 {offsets = [0, 0], sizes = [8, 32], strides = [1, 1]} : vector<8x128xf32> to vector<8x32xf32>
    %278 = arith.negf %277 : vector<8x32xf32>
    %279 = math.exp %278 : vector<8x32xf32>
    %cst_109 = arith.constant 1.000000e+00 : f32
    %280 = vector.broadcast %cst_109 : f32 to vector<8x32xf32>
    %281 = arith.addf %280, %279 : vector<8x32xf32>
    %282 = arith.divf %280, %281 : vector<8x32xf32>
    %283 = vector.extract_strided_slice %276 {offsets = [0, 32], sizes = [8, 32], strides = [1, 1]} : vector<8x128xf32> to vector<8x32xf32>
    %284 = arith.negf %283 : vector<8x32xf32>
    %285 = math.exp %284 : vector<8x32xf32>
    %cst_110 = arith.constant 1.000000e+00 : f32
    %286 = vector.broadcast %cst_110 : f32 to vector<8x32xf32>
    %287 = arith.addf %286, %285 : vector<8x32xf32>
    %288 = arith.divf %286, %287 : vector<8x32xf32>
    %289 = vector.extract_strided_slice %276 {offsets = [0, 64], sizes = [8, 32], strides = [1, 1]} : vector<8x128xf32> to vector<8x32xf32>
    %290 = math.tanh %289 : vector<8x32xf32>
    %291 = vector.extract_strided_slice %276 {offsets = [0, 96], sizes = [8, 32], strides = [1, 1]} : vector<8x128xf32> to vector<8x32xf32>
    %292 = arith.negf %291 : vector<8x32xf32>
    %293 = math.exp %292 : vector<8x32xf32>
    %cst_111 = arith.constant 1.000000e+00 : f32
    %294 = vector.broadcast %cst_111 : f32 to vector<8x32xf32>
    %295 = arith.addf %294, %293 : vector<8x32xf32>
    %296 = arith.divf %294, %295 : vector<8x32xf32>
    %297 = arith.mulf %288, %271 : vector<8x32xf32>
    %298 = arith.mulf %282, %290 : vector<8x32xf32>
    %299 = arith.addf %297, %298 : vector<8x32xf32>
    %300 = math.tanh %299 : vector<8x32xf32>
    %301 = arith.mulf %296, %300 : vector<8x32xf32>
    %302 = vector.extract_strided_slice %130 {offsets = [0, 768], sizes = [8, 128], strides = [1, 1]} : vector<8x1024xf32> to vector<8x128xf32>
    %cst_112 = arith.constant dense<0.000000e+00> : vector<8x128xf32>
    %303 = tpu.matmul %301, %131, %cst_112 {dimension_numbers = #tpu.dot_dimension_numbers<[1], [0], [0], [1], [0, 0, 1, 1], [], []>} : vector<8x32xf32>, vector<32x128xf32>, vector<8x128xf32> -> vector<8x128xf32>
    %304 = arith.addf %302, %303 : vector<8x128xf32>
    %305 = vector.extract_strided_slice %304 {offsets = [0, 0], sizes = [8, 32], strides = [1, 1]} : vector<8x128xf32> to vector<8x32xf32>
    %306 = arith.negf %305 : vector<8x32xf32>
    %307 = math.exp %306 : vector<8x32xf32>
    %cst_113 = arith.constant 1.000000e+00 : f32
    %308 = vector.broadcast %cst_113 : f32 to vector<8x32xf32>
    %309 = arith.addf %308, %307 : vector<8x32xf32>
    %310 = arith.divf %308, %309 : vector<8x32xf32>
    %311 = vector.extract_strided_slice %304 {offsets = [0, 32], sizes = [8, 32], strides = [1, 1]} : vector<8x128xf32> to vector<8x32xf32>
    %312 = arith.negf %311 : vector<8x32xf32>
    %313 = math.exp %312 : vector<8x32xf32>
    %cst_114 = arith.constant 1.000000e+00 : f32
    %314 = vector.broadcast %cst_114 : f32 to vector<8x32xf32>
    %315 = arith.addf %314, %313 : vector<8x32xf32>
    %316 = arith.divf %314, %315 : vector<8x32xf32>
    %317 = vector.extract_strided_slice %304 {offsets = [0, 64], sizes = [8, 32], strides = [1, 1]} : vector<8x128xf32> to vector<8x32xf32>
    %318 = math.tanh %317 : vector<8x32xf32>
    %319 = vector.extract_strided_slice %304 {offsets = [0, 96], sizes = [8, 32], strides = [1, 1]} : vector<8x128xf32> to vector<8x32xf32>
    %320 = arith.negf %319 : vector<8x32xf32>
    %321 = math.exp %320 : vector<8x32xf32>
    %cst_115 = arith.constant 1.000000e+00 : f32
    %322 = vector.broadcast %cst_115 : f32 to vector<8x32xf32>
    %323 = arith.addf %322, %321 : vector<8x32xf32>
    %324 = arith.divf %322, %323 : vector<8x32xf32>
    %325 = arith.mulf %316, %299 : vector<8x32xf32>
    %326 = arith.mulf %310, %318 : vector<8x32xf32>
    %327 = arith.addf %325, %326 : vector<8x32xf32>
    %328 = math.tanh %327 : vector<8x32xf32>
    %329 = arith.mulf %324, %328 : vector<8x32xf32>
    %330 = vector.extract_strided_slice %130 {offsets = [0, 896], sizes = [8, 128], strides = [1, 1]} : vector<8x1024xf32> to vector<8x128xf32>
    %cst_116 = arith.constant dense<0.000000e+00> : vector<8x128xf32>
    %331 = tpu.matmul %329, %131, %cst_116 {dimension_numbers = #tpu.dot_dimension_numbers<[1], [0], [0], [1], [0, 0, 1, 1], [], []>} : vector<8x32xf32>, vector<32x128xf32>, vector<8x128xf32> -> vector<8x128xf32>
    %332 = arith.addf %330, %331 : vector<8x128xf32>
    %333 = vector.extract_strided_slice %332 {offsets = [0, 0], sizes = [8, 32], strides = [1, 1]} : vector<8x128xf32> to vector<8x32xf32>
    %334 = arith.negf %333 : vector<8x32xf32>
    %335 = math.exp %334 : vector<8x32xf32>
    %cst_117 = arith.constant 1.000000e+00 : f32
    %336 = vector.broadcast %cst_117 : f32 to vector<8x32xf32>
    %337 = arith.addf %336, %335 : vector<8x32xf32>
    %338 = arith.divf %336, %337 : vector<8x32xf32>
    %339 = vector.extract_strided_slice %332 {offsets = [0, 32], sizes = [8, 32], strides = [1, 1]} : vector<8x128xf32> to vector<8x32xf32>
    %340 = arith.negf %339 : vector<8x32xf32>
    %341 = math.exp %340 : vector<8x32xf32>
    %cst_118 = arith.constant 1.000000e+00 : f32
    %342 = vector.broadcast %cst_118 : f32 to vector<8x32xf32>
    %343 = arith.addf %342, %341 : vector<8x32xf32>
    %344 = arith.divf %342, %343 : vector<8x32xf32>
    %345 = vector.extract_strided_slice %332 {offsets = [0, 64], sizes = [8, 32], strides = [1, 1]} : vector<8x128xf32> to vector<8x32xf32>
    %346 = math.tanh %345 : vector<8x32xf32>
    %347 = vector.extract_strided_slice %332 {offsets = [0, 96], sizes = [8, 32], strides = [1, 1]} : vector<8x128xf32> to vector<8x32xf32>
    %348 = arith.negf %347 : vector<8x32xf32>
    %349 = math.exp %348 : vector<8x32xf32>
    %cst_119 = arith.constant 1.000000e+00 : f32
    %350 = vector.broadcast %cst_119 : f32 to vector<8x32xf32>
    %351 = arith.addf %350, %349 : vector<8x32xf32>
    %352 = arith.divf %350, %351 : vector<8x32xf32>
    %353 = arith.mulf %344, %327 : vector<8x32xf32>
    %354 = arith.mulf %338, %346 : vector<8x32xf32>
    %355 = arith.addf %353, %354 : vector<8x32xf32>
    %356 = math.tanh %355 : vector<8x32xf32>
    %357 = arith.mulf %352, %356 : vector<8x32xf32>
    %c0_120 = arith.constant 0 : index
    %c0_121 = arith.constant 0 : index
    %358 = vector.load %arg14[%c0_120, %c0_121] : memref<32x16xf32, #tpu.memory_space<vmem>>, vector<32x16xf32>
    %cst_122 = arith.constant dense<0.000000e+00> : vector<8x16xf32>
    %359 = tpu.matmul %357, %358, %cst_122 {dimension_numbers = #tpu.dot_dimension_numbers<[1], [0], [0], [1], [0, 0, 1, 1], [], []>} : vector<8x32xf32>, vector<32x16xf32>, vector<8x16xf32> -> vector<8x16xf32>
    %c0_123 = arith.constant 0 : index
    %c0_124 = arith.constant 0 : index
    %360 = vector.load %arg15[%c0_123, %c0_124] : memref<1x16xf32, #tpu.memory_space<vmem>>, vector<1x16xf32>
    %361 = vector.broadcast %360 : vector<1x16xf32> to vector<8x16xf32>
    %362 = arith.addf %359, %361 : vector<8x16xf32>
    %c0_125 = arith.constant 0 : index
    %c0_126 = arith.constant 0 : index
    %363 = vector.load %arg16[%c0_125, %c0_126] : memref<8x16xf32, #tpu.memory_space<vmem>>, vector<8x16xf32>
    tpu.vector_store %arg16[%c0_125, %c0_126], %362 {strides = array<i32>} : memref<8x16xf32, #tpu.memory_space<vmem>>, vector<8x16xf32>,
    return
  }
}

</mosaic_0001>

<llo_original>
// kernel: forward.1
$region0: #{forward.1}
  #allocation0 [shape = 'u32[]', space=smem, size = 0x4, offset = 0x4, fixed_abs, tag = 'smem constant byte address 0x4 - core index']
  #allocation1 [shape = 'u32[144,128]{1,0:T(1,128)}', space=vmem, size = 0x12000, scoped, tag = 'internal scratch']
  %s0 = inlined_call_operand.vmem [shape: f32[8,32], index: 0, kind: input, shape index: {}]
  %s1 = inlined_call_operand.vmem [shape: f32[32,64], index: 1, kind: input, shape index: {}]
  %s2 = inlined_call_operand.vmem [shape: f32[1,64], index: 2, kind: input, shape index: {}]
  %s3 = inlined_call_operand.vmem [shape: f32[64,64], index: 3, kind: input, shape index: {}]
  %s4 = inlined_call_operand.vmem [shape: f32[1,64], index: 4, kind: input, shape index: {}]
  %s5 = inlined_call_operand.vmem [shape: f32[32,64], index: 5, kind: input, shape index: {}]
  %s6 = inlined_call_operand.vmem [shape: f32[1,64], index: 6, kind: input, shape index: {}]
  %s7 = inlined_call_operand.vmem [shape: f32[3,64,64], index: 7, kind: input, shape index: {}]
  %s8 = inlined_call_operand.vmem [shape: f32[3,1,64], index: 8, kind: input, shape index: {}]
  %s9 = inlined_call_operand.vmem [shape: f32[3,64,64], index: 9, kind: input, shape index: {}]
  %s10 = inlined_call_operand.vmem [shape: f32[3,1,64], index: 10, kind: input, shape index: {}]
  %s11 = inlined_call_operand.vmem [shape: f32[64,1024], index: 11, kind: input, shape index: {}]
  %s12 = inlined_call_operand.vmem [shape: f32[1,1024], index: 12, kind: input, shape index: {}]
  %s13 = inlined_call_operand.vmem [shape: f32[32,128], index: 13, kind: input, shape index: {}]
  %s14 = inlined_call_operand.vmem [shape: f32[32,16], index: 14, kind: input, shape index: {}]
  %s15 = inlined_call_operand.vmem [shape: f32[1,16], index: 15, kind: input, shape index: {}]
  %s16 = inlined_call_operand.vmem [shape: f32[8,16], index: 16, kind: output, shape index: {}]
  %s17 = sld [smem:[#allocation0]]
  $region74: #{forward.1} parent=0
    _
  %s19 = ssub.s32 1, %s17
  %s20 = scalar_select 0, %s19, %s17
  // Predicated region
  $region2: #{forward.1} parent=0 // pred_check
    _
  $region3: #{forward.1} parent=0 // pred_check_branch
    %22 = sbr.rel (0) target = $region5
  $region4: #{forward.1} parent=0 // pred_region
    _
  $region5: #{forward.1} parent=0 // pred_fallthru
    _
  // Predicated region
  $region6: #{forward.1} parent=0 // pred_check
    _
  $region7: #{forward.1} parent=0 // pred_check_branch
    %24 = sbr.rel (0) target = $region9
  $region8: #{forward.1} parent=0 // pred_region
    _
  $region9: #{forward.1} parent=0 // pred_fallthru
    _
  // Predicated region
  $region10: #{forward.1} parent=0 // pred_check
    _
  $region11: #{forward.1} parent=0 // pred_check_branch
    %26 = sbr.rel (0) target = $region13
  $region12: #{forward.1} parent=0 // pred_region
    _
  $region13: #{forward.1} parent=0 // pred_fallthru
    _
  // Predicated region
  $region14: #{forward.1} parent=0 // pred_check
    _
  $region15: #{forward.1} parent=0 // pred_check_branch
    %28 = sbr.rel (0) target = $region17
  $region16: #{forward.1} parent=0 // pred_region
    _
  $region17: #{forward.1} parent=0 // pred_fallthru
    _
  // Predicated region
  $region18: #{forward.1} parent=0 // pred_check
    _
  $region19: #{forward.1} parent=0 // pred_check_branch
    %30 = sbr.rel (0) target = $region21
  $region20: #{forward.1} parent=0 // pred_region
    _
  $region21: #{forward.1} parent=0 // pred_fallthru
    _
  // Predicated region
  $region22: #{forward.1} parent=0 // pred_check
    _
  $region23: #{forward.1} parent=0 // pred_check_branch
    %32 = sbr.rel (0) target = $region25
  $region24: #{forward.1} parent=0 // pred_region
    _
  $region25: #{forward.1} parent=0 // pred_fallthru
    _
  // Predicated region
  $region26: #{forward.1} parent=0 // pred_check
    _
  $region27: #{forward.1} parent=0 // pred_check_branch
    %34 = sbr.rel (0) target = $region29
  $region28: #{forward.1} parent=0 // pred_region
    _
  $region29: #{forward.1} parent=0 // pred_fallthru
    _
  // Predicated region
  $region30: #{forward.1} parent=0 // pred_check
    _
  $region31: #{forward.1} parent=0 // pred_check_branch
    %36 = sbr.rel (0) target = $region33
  $region32: #{forward.1} parent=0 // pred_region
    _
  $region33: #{forward.1} parent=0 // pred_fallthru
    _
  // Predicated region
  $region34: #{forward.1} parent=0 // pred_check
    _
  $region35: #{forward.1} parent=0 // pred_check_branch
    %38 = sbr.rel (0) target = $region37
  $region36: #{forward.1} parent=0 // pred_region
    _
  $region37: #{forward.1} parent=0 // pred_fallthru
    _
  // Predicated region
  $region38: #{forward.1} parent=0 // pred_check
    _
  $region39: #{forward.1} parent=0 // pred_check_branch
    %40 = sbr.rel (0) target = $region41
  $region40: #{forward.1} parent=0 // pred_region
    _
  $region41: #{forward.1} parent=0 // pred_fallthru
    _
  // Predicated region
  $region42: #{forward.1} parent=0 // pred_check
    _
  $region43: #{forward.1} parent=0 // pred_check_branch
    %42 = sbr.rel (0) target = $region45
  $region44: #{forward.1} parent=0 // pred_region
    _
  $region45: #{forward.1} parent=0 // pred_fallthru
    _
  // Predicated region
  $region46: #{forward.1} parent=0 // pred_check
    _
  $region47: #{forward.1} parent=0 // pred_check_branch
    %44 = sbr.rel (0) target = $region49
  $region48: #{forward.1} parent=0 // pred_region
    _
  $region49: #{forward.1} parent=0 // pred_fallthru
    _
  // Predicated region
  $region50: #{forward.1} parent=0 // pred_check
    _
  $region51: #{forward.1} parent=0 // pred_check_branch
    %46 = sbr.rel (0) target = $region53
  $region52: #{forward.1} parent=0 // pred_region
    _
  $region53: #{forward.1} parent=0 // pred_fallthru
    _
  // Predicated region
  $region54: #{forward.1} parent=0 // pred_check
    _
  $region55: #{forward.1} parent=0 // pred_check_branch
    %48 = sbr.rel (0) target = $region57
  $region56: #{forward.1} parent=0 // pred_region
    _
  $region57: #{forward.1} parent=0 // pred_fallthru
    _
  // Predicated region
  $region58: #{forward.1} parent=0 // pred_check
    _
  $region59: #{forward.1} parent=0 // pred_check_branch
    %50 = sbr.rel (0) target = $region61
  $region60: #{forward.1} parent=0 // pred_region
    _
  $region61: #{forward.1} parent=0 // pred_fallthru
    _
  // Predicated region
  $region62: #{forward.1} parent=0 // pred_check
    _
  $region63: #{forward.1} parent=0 // pred_check_branch
    %52 = sbr.rel (0) target = $region65
  $region64: #{forward.1} parent=0 // pred_region
    _
  $region65: #{forward.1} parent=0 // pred_fallthru
    _
  %v53 = vld [vmem:[%s0] sm:$0xff]
  %v54 = vld [vmem:[%s1] sm:$0xff]
  %v55 = vld [vmem:[%s1 + $0x8] sm:$0xff]
  %v56 = vld [vmem:[%s1 + $0x10] sm:$0xff]
  %v57 = vld [vmem:[%s1 + $0x18] sm:$0xff]
  %v58 = vld [vmem:[%s2] sm:$0x1]
  %v60 = vlaneseq
  %v61 = vshrl.u32 %v60, 7
  %v62 = vsub.s32 0, %v61
  %v63 = vrot.slane %v58, %v62
  %vm65 = vcmask 261120
  %v67 = vsel %vm65, %v53, 0
  %69 = vmatprep.subr.mxu0 0.0
  %70 = vmatpush1.msra.mxu0 %v54
  %71 = vmatprep.subr.mxu0 0.0
  %72 = vmatpush1.msra.mxu0 %v55
  %73 = vmatprep.subr.mxu0 0.0
  %74 = vmatpush1.msra.mxu0 %v56
  %75 = vmatprep.subr.mxu0 0.0
  %76 = vmatpush1.msra.mxu0 %v57
  %77 = vmatprep.subr.mxu0 0.0
  %78 = vmatpush1.msra.mxu0 0.0
  %79 = vmatprep.subr.mxu0 0.0
  %80 = vmatpush1.msra.mxu0 0.0
  %81 = vmatprep.subr.mxu0 0.0
  %82 = vmatpush1.msra.mxu0 0.0
  %83 = vmatprep.subr.mxu0 0.0
  %84 = vmatpush1.msra.mxu0 0.0
  %85 = vmatprep.subr.mxu0 0.0
  %86 = vmatpush1.msra.mxu0 0.0
  %87 = vmatprep.subr.mxu0 0.0
  %88 = vmatpush1.msra.mxu0 0.0
  %89 = vmatprep.subr.mxu0 0.0
  %90 = vmatpush1.msra.mxu0 0.0
  %91 = vmatprep.subr.mxu0 0.0
  %92 = vmatpush1.msra.mxu0 0.0
  %93 = vmatprep.subr.mxu0 0.0
  %94 = vmatpush1.msra.mxu0 0.0
  %95 = vmatprep.subr.mxu0 0.0
  %96 = vmatpush1.msra.mxu0 0.0
  %97 = vmatprep.subr.mxu0 0.0
  %98 = vmatpush1.msra.mxu0 0.0
  %99 = vmatprep.subr.mxu0 0.0
  %100 = vmatpush1.msra.mxu0 0.0
  %101 = vmatprep.subr.mxu0 0.0
  %102 = vmatpush1.msra.mxu0 0.0
  %103 = vmatprep.subr.mxu0 0.0
  %104 = vmatpush1.msra.mxu0 0.0
  %105 = vmatprep.subr.mxu0 0.0
  %106 = vmatpush1.msra.mxu0 0.0
  %107 = vmatprep.subr.mxu0 0.0
  %108 = vmatpush1.msra.mxu0 0.0
  %109 = vmatprep.subr.mxu0 0.0
  %110 = vmatpush1.msra.mxu0 0.0
  %111 = vmatprep.subr.mxu0 0.0
  %112 = vmatpush1.msra.mxu0 0.0
  %113 = vmatprep.subr.mxu0 0.0
  %114 = vmatpush1.msra.mxu0 0.0
  %115 = vmatprep.subr.mxu0 0.0
  %116 = vmatpush1.msra.mxu0 0.0
  %117 = vmatprep.subr.mxu0 0.0
  %118 = vmatpush1.msra.mxu0 0.0
  %119 = vmatprep.subr.mxu0 0.0
  %120 = vmatpush1.msra.mxu0 0.0
  %121 = vmatprep.subr.mxu0 0.0
  %122 = vmatpush1.msra.mxu0 0.0
  %123 = vmatprep.subr.mxu0 0.0
  %124 = vmatpush1.msra.mxu0 0.0
  %125 = vmatprep.subr.mxu0 0.0
  %126 = vmatpush1.msra.mxu0 0.0
  %127 = vmatprep.subr.mxu0 0.0
  %128 = vmatpush1.msra.mxu0 0.0
  %129 = vmatprep.subr.mxu0 0.0
  %130 = vmatpush1.msra.mxu0 0.0
  %131 = vmatprep.subr.mxu0 0.0
  %132 = vmatpush1.msra.mxu0 0.0
  %133 = vmatprep.mubr.f32.mxu0 0.0
  %134 = vmatmul.mubr.f32.gmra.mrb[0].mxu0 %v67
  %v135 = vpop.f32.mrb[0].mxu0
  %v136 = vadd.f32 %v63, %v135
  %v137 = vpop.f32.mrb[0].mxu0
  %138 = vdwg.mxu0
  %vm139 = vcmp.gt.f32.partialorder %v136, 0.0
  %v140 = vmin.f32 %v136, 0.0
  %v141 = vmul.f32 %v140, 1.442695
  %v142 = vpow.pop %v141
  %v143 = vsub.f32 %v142, 1.0
  %v144 = vsel %vm139, %v136, %v143
  %v145 = vld [vmem:[%s3] sm:$0xff]
  %v146 = vld [vmem:[%s3 + $0x8] sm:$0xff]
  %v147 = vld [vmem:[%s3 + $0x10] sm:$0xff]
  %v148 = vld [vmem:[%s3 + $0x18] sm:$0xff]
  %v149 = vld [vmem:[%s3 + $0x20] sm:$0xff]
  %v150 = vld [vmem:[%s3 + $0x28] sm:$0xff]
  %v151 = vld [vmem:[%s3 + $0x30] sm:$0xff]
  %v152 = vld [vmem:[%s3 + $0x38] sm:$0xff]
  %v153 = vld [vmem:[%s4] sm:$0x1]
  %v155 = vlaneseq
  %v156 = vshrl.u32 %v155, 7
  %v157 = vsub.s32 0, %v156
  %v158 = vrot.slane %v153, %v157
  %vm160 = vcmask 523264
  %v162 = vsel %vm160, %v144, 0
  %164 = vmatprep.subr.mxu0 0.0
  %165 = vmatpush1.msra.mxu0 %v145
  %166 = vmatprep.subr.mxu0 0.0
  %167 = vmatpush1.msra.mxu0 %v146
  %168 = vmatprep.subr.mxu0 0.0
  %169 = vmatpush1.msra.mxu0 %v147
  %170 = vmatprep.subr.mxu0 0.0
  %171 = vmatpush1.msra.mxu0 %v148
  %172 = vmatprep.subr.mxu0 0.0
  %173 = vmatpush1.msra.mxu0 %v149
  %174 = vmatprep.subr.mxu0 0.0
  %175 = vmatpush1.msra.mxu0 %v150
  %176 = vmatprep.subr.mxu0 0.0
  %177 = vmatpush1.msra.mxu0 %v151
  %178 = vmatprep.subr.mxu0 0.0
  %179 = vmatpush1.msra.mxu0 %v152
  %180 = vmatprep.subr.mxu0 0.0
  %181 = vmatpush1.msra.mxu0 0.0
  %182 = vmatprep.subr.mxu0 0.0
  %183 = vmatpush1.msra.mxu0 0.0
  %184 = vmatprep.subr.mxu0 0.0
  %185 = vmatpush1.msra.mxu0 0.0
  %186 = vmatprep.subr.mxu0 0.0
  %187 = vmatpush1.msra.mxu0 0.0
  %188 = vmatprep.subr.mxu0 0.0
  %189 = vmatpush1.msra.mxu0 0.0
  %190 = vmatprep.subr.mxu0 0.0
  %191 = vmatpush1.msra.mxu0 0.0
  %192 = vmatprep.subr.mxu0 0.0
  %193 = vmatpush1.msra.mxu0 0.0
  %194 = vmatprep.subr.mxu0 0.0
  %195 = vmatpush1.msra.mxu0 0.0
  %196 = vmatprep.subr.mxu0 0.0
  %197 = vmatpush1.msra.mxu0 0.0
  %198 = vmatprep.subr.mxu0 0.0
  %199 = vmatpush1.msra.mxu0 0.0
  %200 = vmatprep.subr.mxu0 0.0
  %201 = vmatpush1.msra.mxu0 0.0
  %202 = vmatprep.subr.mxu0 0.0
  %203 = vmatpush1.msra.mxu0 0.0
  %204 = vmatprep.subr.mxu0 0.0
  %205 = vmatpush1.msra.mxu0 0.0
  %206 = vmatprep.subr.mxu0 0.0
  %207 = vmatpush1.msra.mxu0 0.0
  %208 = vmatprep.subr.mxu0 0.0
  %209 = vmatpush1.msra.mxu0 0.0
  %210 = vmatprep.subr.mxu0 0.0
  %211 = vmatpush1.msra.mxu0 0.0
  %212 = vmatprep.subr.mxu0 0.0
  %213 = vmatpush1.msra.mxu0 0.0
  %214 = vmatprep.subr.mxu0 0.0
  %215 = vmatpush1.msra.mxu0 0.0
  %216 = vmatprep.subr.mxu0 0.0
  %217 = vmatpush1.msra.mxu0 0.0
  %218 = vmatprep.subr.mxu0 0.0
  %219 = vmatpush1.msra.mxu0 0.0
  %220 = vmatprep.subr.mxu0 0.0
  %221 = vmatpush1.msra.mxu0 0.0
  %222 = vmatprep.subr.mxu0 0.0
  %223 = vmatpush1.msra.mxu0 0.0
  %224 = vmatprep.subr.mxu0 0.0
  %225 = vmatpush1.msra.mxu0 0.0
  %226 = vmatprep.subr.mxu0 0.0
  %227 = vmatpush1.msra.mxu0 0.0
  %228 = vmatprep.mubr.f32.mxu0 0.0
  %229 = vmatmul.mubr.f32.gmra.mrb[0].mxu0 %v162
  %v230 = vpop.f32.mrb[0].mxu0
  %v231 = vadd.f32 %v158, %v230
  %v232 = vpop.f32.mrb[0].mxu0
  %233 = vdwg.mxu0
  %v234 = vld [vmem:[%s5] sm:$0xff]
  %v235 = vld [vmem:[%s5 + $0x8] sm:$0xff]
  %v236 = vld [vmem:[%s5 + $0x10] sm:$0xff]
  %v237 = vld [vmem:[%s5 + $0x18] sm:$0xff]
  %v238 = vld [vmem:[%s6] sm:$0x1]
  %v240 = vlaneseq
  %v241 = vshrl.u32 %v240, 7
  %v242 = vsub.s32 0, %v241
  %v243 = vrot.slane %v238, %v242
  %245 = vmatprep.subr.mxu0 0.0
  %246 = vmatpush1.msra.mxu0 %v234
  %247 = vmatprep.subr.mxu0 0.0
  %248 = vmatpush1.msra.mxu0 %v235
  %249 = vmatprep.subr.mxu0 0.0
  %250 = vmatpush1.msra.mxu0 %v236
  %251 = vmatprep.subr.mxu0 0.0
  %252 = vmatpush1.msra.mxu0 %v237
  %253 = vmatprep.subr.mxu0 0.0
  %254 = vmatpush1.msra.mxu0 0.0
  %255 = vmatprep.subr.mxu0 0.0
  %256 = vmatpush1.msra.mxu0 0.0
  %257 = vmatprep.subr.mxu0 0.0
  %258 = vmatpush1.msra.mxu0 0.0
  %259 = vmatprep.subr.mxu0 0.0
  %260 = vmatpush1.msra.mxu0 0.0
  %261 = vmatprep.subr.mxu0 0.0
  %262 = vmatpush1.msra.mxu0 0.0
  %263 = vmatprep.subr.mxu0 0.0
  %264 = vmatpush1.msra.mxu0 0.0
  %265 = vmatprep.subr.mxu0 0.0
  %266 = vmatpush1.msra.mxu0 0.0
  %267 = vmatprep.subr.mxu0 0.0
  %268 = vmatpush1.msra.mxu0 0.0
  %269 = vmatprep.subr.mxu0 0.0
  %270 = vmatpush1.msra.mxu0 0.0
  %271 = vmatprep.subr.mxu0 0.0
  %272 = vmatpush1.msra.mxu0 0.0
  %273 = vmatprep.subr.mxu0 0.0
  %274 = vmatpush1.msra.mxu0 0.0
  %275 = vmatprep.subr.mxu0 0.0
  %276 = vmatpush1.msra.mxu0 0.0
  %277 = vmatprep.subr.mxu0 0.0
  %278 = vmatpush1.msra.mxu0 0.0
  %279 = vmatprep.subr.mxu0 0.0
  %280 = vmatpush1.msra.mxu0 0.0
  %281 = vmatprep.subr.mxu0 0.0
  %282 = vmatpush1.msra.mxu0 0.0
  %283 = vmatprep.subr.mxu0 0.0
  %284 = vmatpush1.msra.mxu0 0.0
  %285 = vmatprep.subr.mxu0 0.0
  %286 = vmatpush1.msra.mxu0 0.0
  %287 = vmatprep.subr.mxu0 0.0
  %288 = vmatpush1.msra.mxu0 0.0
  %289 = vmatprep.subr.mxu0 0.0
  %290 = vmatpush1.msra.mxu0 0.0
  %291 = vmatprep.subr.mxu0 0.0
  %292 = vmatpush1.msra.mxu0 0.0
  %293 = vmatprep.subr.mxu0 0.0
  %294 = vmatpush1.msra.mxu0 0.0
  %295 = vmatprep.subr.mxu0 0.0
  %296 = vmatpush1.msra.mxu0 0.0
  %297 = vmatprep.subr.mxu0 0.0
  %298 = vmatpush1.msra.mxu0 0.0
  %299 = vmatprep.subr.mxu0 0.0
  %300 = vmatpush1.msra.mxu0 0.0
  %301 = vmatprep.subr.mxu0 0.0
  %302 = vmatpush1.msra.mxu0 0.0
  %303 = vmatprep.subr.mxu0 0.0
  %304 = vmatpush1.msra.mxu0 0.0
  %305 = vmatprep.subr.mxu0 0.0
  %306 = vmatpush1.msra.mxu0 0.0
  %307 = vmatprep.subr.mxu0 0.0
  %308 = vmatpush1.msra.mxu0 0.0
  %309 = vmatprep.mubr.f32.mxu0 0.0
  %310 = vmatmul.mubr.f32.gmra.mrb[0].mxu0 %v67
  %v311 = vpop.f32.mrb[0].mxu0
  %v312 = vadd.f32 %v243, %v311
  %v313 = vpop.f32.mrb[0].mxu0
  %314 = vdwg.mxu0
  %v315 = vadd.f32 %v231, %v312
  %vm316 = vcmp.gt.f32.partialorder %v315, 0.0
  %v317 = vmin.f32 %v315, 0.0
  %v318 = vmul.f32 %v317, 1.442695
  %v319 = vpow.pop %v318
  %v320 = vsub.f32 %v319, 1.0
  %v321 = vsel %vm316, %v315, %v320
  %v322 = vld [vmem:[%s7] sm:$0xff]
  %v323 = vld [vmem:[%s7 + $0x8] sm:$0xff]
  %v324 = vld [vmem:[%s7 + $0x10] sm:$0xff]
  %v325 = vld [vmem:[%s7 + $0x18] sm:$0xff]
  %v326 = vld [vmem:[%s7 + $0x20] sm:$0xff]
  %v327 = vld [vmem:[%s7 + $0x28] sm:$0xff]
  %v328 = vld [vmem:[%s7 + $0x30] sm:$0xff]
  %v329 = vld [vmem:[%s7 + $0x38] sm:$0xff]
  %v330 = vld [vmem:[%s8] sm:$0x1]
  %v332 = vlaneseq
  %v333 = vshrl.u32 %v332, 7
  %v334 = vsub.s32 0, %v333
  %v335 = vrot.slane %v330, %v334
  %v338 = vsel %vm160, %v321, 0
  %340 = vmatprep.subr.mxu0 0.0
  %341 = vmatpush1.msra.mxu0 %v322
  %342 = vmatprep.subr.mxu0 0.0
  %343 = vmatpush1.msra.mxu0 %v323
  %344 = vmatprep.subr.mxu0 0.0
  %345 = vmatpush1.msra.mxu0 %v324
  %346 = vmatprep.subr.mxu0 0.0
  %347 = vmatpush1.msra.mxu0 %v325
  %348 = vmatprep.subr.mxu0 0.0
  %349 = vmatpush1.msra.mxu0 %v326
  %350 = vmatprep.subr.mxu0 0.0
  %351 = vmatpush1.msra.mxu0 %v327
  %352 = vmatprep.subr.mxu0 0.0
  %353 = vmatpush1.msra.mxu0 %v328
  %354 = vmatprep.subr.mxu0 0.0
  %355 = vmatpush1.msra.mxu0 %v329
  %356 = vmatprep.subr.mxu0 0.0
  %357 = vmatpush1.msra.mxu0 0.0
  %358 = vmatprep.subr.mxu0 0.0
  %359 = vmatpush1.msra.mxu0 0.0
  %360 = vmatprep.subr.mxu0 0.0
  %361 = vmatpush1.msra.mxu0 0.0
  %362 = vmatprep.subr.mxu0 0.0
  %363 = vmatpush1.msra.mxu0 0.0
  %364 = vmatprep.subr.mxu0 0.0
  %365 = vmatpush1.msra.mxu0 0.0
  %366 = vmatprep.subr.mxu0 0.0
  %367 = vmatpush1.msra.mxu0 0.0
  %368 = vmatprep.subr.mxu0 0.0
  %369 = vmatpush1.msra.mxu0 0.0
  %370 = vmatprep.subr.mxu0 0.0
  %371 = vmatpush1.msra.mxu0 0.0
  %372 = vmatprep.subr.mxu0 0.0
  %373 = vmatpush1.msra.mxu0 0.0
  %374 = vmatprep.subr.mxu0 0.0
  %375 = vmatpush1.msra.mxu0 0.0
  %376 = vmatprep.subr.mxu0 0.0
  %377 = vmatpush1.msra.mxu0 0.0
  %378 = vmatprep.subr.mxu0 0.0
  %379 = vmatpush1.msra.mxu0 0.0
  %380 = vmatprep.subr.mxu0 0.0
  %381 = vmatpush1.msra.mxu0 0.0
  %382 = vmatprep.subr.mxu0 0.0
  %383 = vmatpush1.msra.mxu0 0.0
  %384 = vmatprep.subr.mxu0 0.0
  %385 = vmatpush1.msra.mxu0 0.0
  %386 = vmatprep.subr.mxu0 0.0
  %387 = vmatpush1.msra.mxu0 0.0
  %388 = vmatprep.subr.mxu0 0.0
  %389 = vmatpush1.msra.mxu0 0.0
  %390 = vmatprep.subr.mxu0 0.0
  %391 = vmatpush1.msra.mxu0 0.0
  %392 = vmatprep.subr.mxu0 0.0
  %393 = vmatpush1.msra.mxu0 0.0
  %394 = vmatprep.subr.mxu0 0.0
  %395 = vmatpush1.msra.mxu0 0.0
  %396 = vmatprep.subr.mxu0 0.0
  %397 = vmatpush1.msra.mxu0 0.0
  %398 = vmatprep.subr.mxu0 0.0
  %399 = vmatpush1.msra.mxu0 0.0
  %400 = vmatprep.subr.mxu0 0.0
  %401 = vmatpush1.msra.mxu0 0.0
  %402 = vmatprep.subr.mxu0 0.0
  %403 = vmatpush1.msra.mxu0 0.0
  %404 = vmatprep.mubr.f32.mxu0 0.0
  %405 = vmatmul.mubr.f32.gmra.mrb[0].mxu0 %v338
  %v406 = vpop.f32.mrb[0].mxu0
  %v407 = vadd.f32 %v335, %v406
  %v408 = vpop.f32.mrb[0].mxu0
  %409 = vdwg.mxu0
  %vm410 = vcmp.gt.f32.partialorder %v407, 0.0
  %v411 = vmin.f32 %v407, 0.0
  %v412 = vmul.f32 %v411, 1.442695
  %v413 = vpow.pop %v412
  %v414 = vsub.f32 %v413, 1.0
  %v415 = vsel %vm410, %v407, %v414
  %v416 = vld [vmem:[%s9] sm:$0xff]
  %v417 = vld [vmem:[%s9 + $0x8] sm:$0xff]
  %v418 = vld [vmem:[%s9 + $0x10] sm:$0xff]
  %v419 = vld [vmem:[%s9 + $0x18] sm:$0xff]
  %v420 = vld [vmem:[%s9 + $0x20] sm:$0xff]
  %v421 = vld [vmem:[%s9 + $0x28] sm:$0xff]
  %v422 = vld [vmem:[%s9 + $0x30] sm:$0xff]
  %v423 = vld [vmem:[%s9 + $0x38] sm:$0xff]
  %v424 = vld [vmem:[%s10] sm:$0x1]
  %v426 = vlaneseq
  %v427 = vshrl.u32 %v426, 7
  %v428 = vsub.s32 0, %v427
  %v429 = vrot.slane %v424, %v428
  %v432 = vsel %vm160, %v415, 0
  %434 = vmatprep.subr.mxu0 0.0
  %435 = vmatpush1.msra.mxu0 %v416
  %436 = vmatprep.subr.mxu0 0.0
  %437 = vmatpush1.msra.mxu0 %v417
  %438 = vmatprep.subr.mxu0 0.0
  %439 = vmatpush1.msra.mxu0 %v418
  %440 = vmatprep.subr.mxu0 0.0
  %441 = vmatpush1.msra.mxu0 %v419
  %442 = vmatprep.subr.mxu0 0.0
  %443 = vmatpush1.msra.mxu0 %v420
  %444 = vmatprep.subr.mxu0 0.0
  %445 = vmatpush1.msra.mxu0 %v421
  %446 = vmatprep.subr.mxu0 0.0
  %447 = vmatpush1.msra.mxu0 %v422
  %448 = vmatprep.subr.mxu0 0.0
  %449 = vmatpush1.msra.mxu0 %v423
  %450 = vmatprep.subr.mxu0 0.0
  %451 = vmatpush1.msra.mxu0 0.0
  %452 = vmatprep.subr.mxu0 0.0
  %453 = vmatpush1.msra.mxu0 0.0
  %454 = vmatprep.subr.mxu0 0.0
  %455 = vmatpush1.msra.mxu0 0.0
  %456 = vmatprep.subr.mxu0 0.0
  %457 = vmatpush1.msra.mxu0 0.0
  %458 = vmatprep.subr.mxu0 0.0
  %459 = vmatpush1.msra.mxu0 0.0
  %460 = vmatprep.subr.mxu0 0.0
  %461 = vmatpush1.msra.mxu0 0.0
  %462 = vmatprep.subr.mxu0 0.0
  %463 = vmatpush1.msra.mxu0 0.0
  %464 = vmatprep.subr.mxu0 0.0
  %465 = vmatpush1.msra.mxu0 0.0
  %466 = vmatprep.subr.mxu0 0.0
  %467 = vmatpush1.msra.mxu0 0.0
  %468 = vmatprep.subr.mxu0 0.0
  %469 = vmatpush1.msra.mxu0 0.0
  %470 = vmatprep.subr.mxu0 0.0
  %471 = vmatpush1.msra.mxu0 0.0
  %472 = vmatprep.subr.mxu0 0.0
  %473 = vmatpush1.msra.mxu0 0.0
  %474 = vmatprep.subr.mxu0 0.0
  %475 = vmatpush1.msra.mxu0 0.0
  %476 = vmatprep.subr.mxu0 0.0
  %477 = vmatpush1.msra.mxu0 0.0
  %478 = vmatprep.subr.mxu0 0.0
  %479 = vmatpush1.msra.mxu0 0.0
  %480 = vmatprep.subr.mxu0 0.0
  %481 = vmatpush1.msra.mxu0 0.0
  %482 = vmatprep.subr.mxu0 0.0
  %483 = vmatpush1.msra.mxu0 0.0
  %484 = vmatprep.subr.mxu0 0.0
  %485 = vmatpush1.msra.mxu0 0.0
  %486 = vmatprep.subr.mxu0 0.0
  %487 = vmatpush1.msra.mxu0 0.0
  %488 = vmatprep.subr.mxu0 0.0
  %489 = vmatpush1.msra.mxu0 0.0
  %490 = vmatprep.subr.mxu0 0.0
  %491 = vmatpush1.msra.mxu0 0.0
  %492 = vmatprep.subr.mxu0 0.0
  %493 = vmatpush1.msra.mxu0 0.0
  %494 = vmatprep.subr.mxu0 0.0
  %495 = vmatpush1.msra.mxu0 0.0
  %496 = vmatprep.subr.mxu0 0.0
  %497 = vmatpush1.msra.mxu0 0.0
  %498 = vmatprep.mubr.f32.mxu0 0.0
  %499 = vmatmul.mubr.f32.gmra.mrb[0].mxu0 %v432
  %v500 = vpop.f32.mrb[0].mxu0
  %v501 = vadd.f32 %v429, %v500
  %v502 = vpop.f32.mrb[0].mxu0
  %503 = vdwg.mxu0
  %v504 = vadd.f32 %v501, %v321
  %vm505 = vcmp.gt.f32.partialorder %v504, 0.0
  %v506 = vmin.f32 %v504, 0.0
  %v507 = vmul.f32 %v506, 1.442695
  %v508 = vpow.pop %v507
  %v509 = vsub.f32 %v508, 1.0
  %v510 = vsel %vm505, %v504, %v509
  %s511 = scalar_lea.vmem %s7, 64
  %v512 = vld [vmem:[%s511] sm:$0xff]
  %v513 = vld [vmem:[%s511 + $0x8] sm:$0xff]
  %v514 = vld [vmem:[%s511 + $0x10] sm:$0xff]
  %v515 = vld [vmem:[%s511 + $0x18] sm:$0xff]
  %v516 = vld [vmem:[%s511 + $0x20] sm:$0xff]
  %v517 = vld [vmem:[%s511 + $0x28] sm:$0xff]
  %v518 = vld [vmem:[%s511 + $0x30] sm:$0xff]
  %v519 = vld [vmem:[%s511 + $0x38] sm:$0xff]
  %s520 = scalar_lea.vmem %s8, 1
  %v521 = vld [vmem:[%s520] sm:$0x1]
  %v523 = vlaneseq
  %v524 = vshrl.u32 %v523, 7
  %v525 = vsub.s32 0, %v524
  %v526 = vrot.slane %v521, %v525
  %v529 = vsel %vm160, %v510, 0
  %531 = vmatprep.subr.mxu0 0.0
  %532 = vmatpush1.msra.mxu0 %v512
  %533 = vmatprep.subr.mxu0 0.0
  %534 = vmatpush1.msra.mxu0 %v513
  %535 = vmatprep.subr.mxu0 0.0
  %536 = vmatpush1.msra.mxu0 %v514
  %537 = vmatprep.subr.mxu0 0.0
  %538 = vmatpush1.msra.mxu0 %v515
  %539 = vmatprep.subr.mxu0 0.0
  %540 = vmatpush1.msra.mxu0 %v516
  %541 = vmatprep.subr.mxu0 0.0
  %542 = vmatpush1.msra.mxu0 %v517
  %543 = vmatprep.subr.mxu0 0.0
  %544 = vmatpush1.msra.mxu0 %v518
  %545 = vmatprep.subr.mxu0 0.0
  %546 = vmatpush1.msra.mxu0 %v519
  %547 = vmatprep.subr.mxu0 0.0
  %548 = vmatpush1.msra.mxu0 0.0
  %549 = vmatprep.subr.mxu0 0.0
  %550 = vmatpush1.msra.mxu0 0.0
  %551 = vmatprep.subr.mxu0 0.0
  %552 = vmatpush1.msra.mxu0 0.0
  %553 = vmatprep.subr.mxu0 0.0
  %554 = vmatpush1.msra.mxu0 0.0
  %555 = vmatprep.subr.mxu0 0.0
  %556 = vmatpush1.msra.mxu0 0.0
  %557 = vmatprep.subr.mxu0 0.0
  %558 = vmatpush1.msra.mxu0 0.0
  %559 = vmatprep.subr.mxu0 0.0
  %560 = vmatpush1.msra.mxu0 0.0
  %561 = vmatprep.subr.mxu0 0.0
  %562 = vmatpush1.msra.mxu0 0.0
  %563 = vmatprep.subr.mxu0 0.0
  %564 = vmatpush1.msra.mxu0 0.0
  %565 = vmatprep.subr.mxu0 0.0
  %566 = vmatpush1.msra.mxu0 0.0
  %567 = vmatprep.subr.mxu0 0.0
  %568 = vmatpush1.msra.mxu0 0.0
  %569 = vmatprep.subr.mxu0 0.0
  %570 = vmatpush1.msra.mxu0 0.0
  %571 = vmatprep.subr.mxu0 0.0
  %572 = vmatpush1.msra.mxu0 0.0
  %573 = vmatprep.subr.mxu0 0.0
  %574 = vmatpush1.msra.mxu0 0.0
  %575 = vmatprep.subr.mxu0 0.0
  %576 = vmatpush1.msra.mxu0 0.0
  %577 = vmatprep.subr.mxu0 0.0
  %578 = vmatpush1.msra.mxu0 0.0
  %579 = vmatprep.subr.mxu0 0.0
  %580 = vmatpush1.msra.mxu0 0.0
  %581 = vmatprep.subr.mxu0 0.0
  %582 = vmatpush1.msra.mxu0 0.0
  %583 = vmatprep.subr.mxu0 0.0
  %584 = vmatpush1.msra.mxu0 0.0
  %585 = vmatprep.subr.mxu0 0.0
  %586 = vmatpush1.msra.mxu0 0.0
  %587 = vmatprep.subr.mxu0 0.0
  %588 = vmatpush1.msra.mxu0 0.0
  %589 = vmatprep.subr.mxu0 0.0
  %590 = vmatpush1.msra.mxu0 0.0
  %591 = vmatprep.subr.mxu0 0.0
  %592 = vmatpush1.msra.mxu0 0.0
  %593 = vmatprep.subr.mxu0 0.0
  %594 = vmatpush1.msra.mxu0 0.0
  %595 = vmatprep.mubr.f32.mxu0 0.0
  %596 = vmatmul.mubr.f32.gmra.mrb[0].mxu0 %v529
  %v597 = vpop.f32.mrb[0].mxu0
  %v598 = vadd.f32 %v526, %v597
  %v599 = vpop.f32.mrb[0].mxu0
  %600 = vdwg.mxu0
  %vm601 = vcmp.gt.f32.partialorder %v598, 0.0
  %v602 = vmin.f32 %v598, 0.0
  %v603 = vmul.f32 %v602, 1.442695
  %v604 = vpow.pop %v603
  %v605 = vsub.f32 %v604, 1.0
  %v606 = vsel %vm601, %v598, %v605
  %s607 = scalar_lea.vmem %s9, 64
  %v608 = vld [vmem:[%s607] sm:$0xff]
  %v609 = vld [vmem:[%s607 + $0x8] sm:$0xff]
  %v610 = vld [vmem:[%s607 + $0x10] sm:$0xff]
  %v611 = vld [vmem:[%s607 + $0x18] sm:$0xff]
  %v612 = vld [vmem:[%s607 + $0x20] sm:$0xff]
  %v613 = vld [vmem:[%s607 + $0x28] sm:$0xff]
  %v614 = vld [vmem:[%s607 + $0x30] sm:$0xff]
  %v615 = vld [vmem:[%s607 + $0x38] sm:$0xff]
  %s616 = scalar_lea.vmem %s10, 1
  %v617 = vld [vmem:[%s616] sm:$0x1]
  %v619 = vlaneseq
  %v620 = vshrl.u32 %v619, 7
  %v621 = vsub.s32 0, %v620
  %v622 = vrot.slane %v617, %v621
  %v625 = vsel %vm160, %v606, 0
  %627 = vmatprep.subr.mxu0 0.0
  %628 = vmatpush1.msra.mxu0 %v608
  %629 = vmatprep.subr.mxu0 0.0
  %630 = vmatpush1.msra.mxu0 %v609
  %631 = vmatprep.subr.mxu0 0.0
  %632 = vmatpush1.msra.mxu0 %v610
  %633 = vmatprep.subr.mxu0 0.0
  %634 = vmatpush1.msra.mxu0 %v611
  %635 = vmatprep.subr.mxu0 0.0
  %636 = vmatpush1.msra.mxu0 %v612
  %637 = vmatprep.subr.mxu0 0.0
  %638 = vmatpush1.msra.mxu0 %v613
  %639 = vmatprep.subr.mxu0 0.0
  %640 = vmatpush1.msra.mxu0 %v614
  %641 = vmatprep.subr.mxu0 0.0
  %642 = vmatpush1.msra.mxu0 %v615
  %643 = vmatprep.subr.mxu0 0.0
  %644 = vmatpush1.msra.mxu0 0.0
  %645 = vmatprep.subr.mxu0 0.0
  %646 = vmatpush1.msra.mxu0 0.0
  %647 = vmatprep.subr.mxu0 0.0
  %648 = vmatpush1.msra.mxu0 0.0
  %649 = vmatprep.subr.mxu0 0.0
  %650 = vmatpush1.msra.mxu0 0.0
  %651 = vmatprep.subr.mxu0 0.0
  %652 = vmatpush1.msra.mxu0 0.0
  %653 = vmatprep.subr.mxu0 0.0
  %654 = vmatpush1.msra.mxu0 0.0
  %655 = vmatprep.subr.mxu0 0.0
  %656 = vmatpush1.msra.mxu0 0.0
  %657 = vmatprep.subr.mxu0 0.0
  %658 = vmatpush1.msra.mxu0 0.0
  %659 = vmatprep.subr.mxu0 0.0
  %660 = vmatpush1.msra.mxu0 0.0
  %661 = vmatprep.subr.mxu0 0.0
  %662 = vmatpush1.msra.mxu0 0.0
  %663 = vmatprep.subr.mxu0 0.0
  %664 = vmatpush1.msra.mxu0 0.0
  %665 = vmatprep.subr.mxu0 0.0
  %666 = vmatpush1.msra.mxu0 0.0
  %667 = vmatprep.subr.mxu0 0.0
  %668 = vmatpush1.msra.mxu0 0.0
  %669 = vmatprep.subr.mxu0 0.0
  %670 = vmatpush1.msra.mxu0 0.0
  %671 = vmatprep.subr.mxu0 0.0
  %672 = vmatpush1.msra.mxu0 0.0
  %673 = vmatprep.subr.mxu0 0.0
  %674 = vmatpush1.msra.mxu0 0.0
  %675 = vmatprep.subr.mxu0 0.0
  %676 = vmatpush1.msra.mxu0 0.0
  %677 = vmatprep.subr.mxu0 0.0
  %678 = vmatpush1.msra.mxu0 0.0
  %679 = vmatprep.subr.mxu0 0.0
  %680 = vmatpush1.msra.mxu0 0.0
  %681 = vmatprep.subr.mxu0 0.0
  %682 = vmatpush1.msra.mxu0 0.0
  %683 = vmatprep.subr.mxu0 0.0
  %684 = vmatpush1.msra.mxu0 0.0
  %685 = vmatprep.subr.mxu0 0.0
  %686 = vmatpush1.msra.mxu0 0.0
  %687 = vmatprep.subr.mxu0 0.0
  %688 = vmatpush1.msra.mxu0 0.0
  %689 = vmatprep.subr.mxu0 0.0
  %690 = vmatpush1.msra.mxu0 0.0
  %691 = vmatprep.mubr.f32.mxu0 0.0
  %692 = vmatmul.mubr.f32.gmra.mrb[0].mxu0 %v625
  %v693 = vpop.f32.mrb[0].mxu0
  %v694 = vadd.f32 %v622, %v693
  %v695 = vpop.f32.mrb[0].mxu0
  %696 = vdwg.mxu0
  %v697 = vadd.f32 %v694, %v510
  %vm698 = vcmp.gt.f32.partialorder %v697, 0.0
  %v699 = vmin.f32 %v697, 0.0
  %v700 = vmul.f32 %v699, 1.442695
  %v701 = vpow.pop %v700
  %v702 = vsub.f32 %v701, 1.0
  %v703 = vsel %vm698, %v697, %v702
  %s704 = scalar_lea.vmem %s7, 128
  %v705 = vld [vmem:[%s704] sm:$0xff]
  %v706 = vld [vmem:[%s704 + $0x8] sm:$0xff]
  %v707 = vld [vmem:[%s704 + $0x10] sm:$0xff]
  %v708 = vld [vmem:[%s704 + $0x18] sm:$0xff]
  %v709 = vld [vmem:[%s704 + $0x20] sm:$0xff]
  %v710 = vld [vmem:[%s704 + $0x28] sm:$0xff]
  %v711 = vld [vmem:[%s704 + $0x30] sm:$0xff]
  %v712 = vld [vmem:[%s704 + $0x38] sm:$0xff]
  %s713 = scalar_lea.vmem %s8, 2
  %v714 = vld [vmem:[%s713] sm:$0x1]
  %v716 = vlaneseq
  %v717 = vshrl.u32 %v716, 7
  %v718 = vsub.s32 0, %v717
  %v719 = vrot.slane %v714, %v718
  %v722 = vsel %vm160, %v703, 0
  %724 = vmatprep.subr.mxu0 0.0
  %725 = vmatpush1.msra.mxu0 %v705
  %726 = vmatprep.subr.mxu0 0.0
  %727 = vmatpush1.msra.mxu0 %v706
  %728 = vmatprep.subr.mxu0 0.0
  %729 = vmatpush1.msra.mxu0 %v707
  %730 = vmatprep.subr.mxu0 0.0
  %731 = vmatpush1.msra.mxu0 %v708
  %732 = vmatprep.subr.mxu0 0.0
  %733 = vmatpush1.msra.mxu0 %v709
  %734 = vmatprep.subr.mxu0 0.0
  %735 = vmatpush1.msra.mxu0 %v710
  %736 = vmatprep.subr.mxu0 0.0
  %737 = vmatpush1.msra.mxu0 %v711
  %738 = vmatprep.subr.mxu0 0.0
  %739 = vmatpush1.msra.mxu0 %v712
  %740 = vmatprep.subr.mxu0 0.0
  %741 = vmatpush1.msra.mxu0 0.0
  %742 = vmatprep.subr.mxu0 0.0
  %743 = vmatpush1.msra.mxu0 0.0
  %744 = vmatprep.subr.mxu0 0.0
  %745 = vmatpush1.msra.mxu0 0.0
  %746 = vmatprep.subr.mxu0 0.0
  %747 = vmatpush1.msra.mxu0 0.0
  %748 = vmatprep.subr.mxu0 0.0
  %749 = vmatpush1.msra.mxu0 0.0
  %750 = vmatprep.subr.mxu0 0.0
  %751 = vmatpush1.msra.mxu0 0.0
  %752 = vmatprep.subr.mxu0 0.0
  %753 = vmatpush1.msra.mxu0 0.0
  %754 = vmatprep.subr.mxu0 0.0
  %755 = vmatpush1.msra.mxu0 0.0
  %756 = vmatprep.subr.mxu0 0.0
  %757 = vmatpush1.msra.mxu0 0.0
  %758 = vmatprep.subr.mxu0 0.0
  %759 = vmatpush1.msra.mxu0 0.0
  %760 = vmatprep.subr.mxu0 0.0
  %761 = vmatpush1.msra.mxu0 0.0
  %762 = vmatprep.subr.mxu0 0.0
  %763 = vmatpush1.msra.mxu0 0.0
  %764 = vmatprep.subr.mxu0 0.0
  %765 = vmatpush1.msra.mxu0 0.0
  %766 = vmatprep.subr.mxu0 0.0
  %767 = vmatpush1.msra.mxu0 0.0
  %768 = vmatprep.subr.mxu0 0.0
  %769 = vmatpush1.msra.mxu0 0.0
  %770 = vmatprep.subr.mxu0 0.0
  %771 = vmatpush1.msra.mxu0 0.0
  %772 = vmatprep.subr.mxu0 0.0
  %773 = vmatpush1.msra.mxu0 0.0
  %774 = vmatprep.subr.mxu0 0.0
  %775 = vmatpush1.msra.mxu0 0.0
  %776 = vmatprep.subr.mxu0 0.0
  %777 = vmatpush1.msra.mxu0 0.0
  %778 = vmatprep.subr.mxu0 0.0
  %779 = vmatpush1.msra.mxu0 0.0
  %780 = vmatprep.subr.mxu0 0.0
  %781 = vmatpush1.msra.mxu0 0.0
  %782 = vmatprep.subr.mxu0 0.0
  %783 = vmatpush1.msra.mxu0 0.0
  %784 = vmatprep.subr.mxu0 0.0
  %785 = vmatpush1.msra.mxu0 0.0
  %786 = vmatprep.subr.mxu0 0.0
  %787 = vmatpush1.msra.mxu0 0.0
  %788 = vmatprep.mubr.f32.mxu0 0.0
  %789 = vmatmul.mubr.f32.gmra.mrb[0].mxu0 %v722
  %v790 = vpop.f32.mrb[0].mxu0
  %v791 = vadd.f32 %v719, %v790
  %v792 = vpop.f32.mrb[0].mxu0
  %793 = vdwg.mxu0
  %vm794 = vcmp.gt.f32.partialorder %v791, 0.0
  %v795 = vmin.f32 %v791, 0.0
  %v796 = vmul.f32 %v795, 1.442695
  %v797 = vpow.pop %v796
  %v798 = vsub.f32 %v797, 1.0
  %v799 = vsel %vm794, %v791, %v798
  %s800 = scalar_lea.vmem %s9, 128
  %v801 = vld [vmem:[%s800] sm:$0xff]
  %v802 = vld [vmem:[%s800 + $0x8] sm:$0xff]
  %v803 = vld [vmem:[%s800 + $0x10] sm:$0xff]
  %v804 = vld [vmem:[%s800 + $0x18] sm:$0xff]
  %v805 = vld [vmem:[%s800 + $0x20] sm:$0xff]
  %v806 = vld [vmem:[%s800 + $0x28] sm:$0xff]
  %v807 = vld [vmem:[%s800 + $0x30] sm:$0xff]
  %v808 = vld [vmem:[%s800 + $0x38] sm:$0xff]
  %s809 = scalar_lea.vmem %s10, 2
  %v810 = vld [vmem:[%s809] sm:$0x1]
  %v812 = vlaneseq
  %v813 = vshrl.u32 %v812, 7
  %v814 = vsub.s32 0, %v813
  %v815 = vrot.slane %v810, %v814
  %v818 = vsel %vm160, %v799, 0
  %820 = vmatprep.subr.mxu0 0.0
  %821 = vmatpush1.msra.mxu0 %v801
  %822 = vmatprep.subr.mxu0 0.0
  %823 = vmatpush1.msra.mxu0 %v802
  %824 = vmatprep.subr.mxu0 0.0
  %825 = vmatpush1.msra.mxu0 %v803
  %826 = vmatprep.subr.mxu0 0.0
  %827 = vmatpush1.msra.mxu0 %v804
  %828 = vmatprep.subr.mxu0 0.0
  %829 = vmatpush1.msra.mxu0 %v805
  %830 = vmatprep.subr.mxu0 0.0
  %831 = vmatpush1.msra.mxu0 %v806
  %832 = vmatprep.subr.mxu0 0.0
  %833 = vmatpush1.msra.mxu0 %v807
  %834 = vmatprep.subr.mxu0 0.0
  %835 = vmatpush1.msra.mxu0 %v808
  %836 = vmatprep.subr.mxu0 0.0
  %837 = vmatpush1.msra.mxu0 0.0
  %838 = vmatprep.subr.mxu0 0.0
  %839 = vmatpush1.msra.mxu0 0.0
  %840 = vmatprep.subr.mxu0 0.0
  %841 = vmatpush1.msra.mxu0 0.0
  %842 = vmatprep.subr.mxu0 0.0
  %843 = vmatpush1.msra.mxu0 0.0
  %844 = vmatprep.subr.mxu0 0.0
  %845 = vmatpush1.msra.mxu0 0.0
  %846 = vmatprep.subr.mxu0 0.0
  %847 = vmatpush1.msra.mxu0 0.0
  %848 = vmatprep.subr.mxu0 0.0
  %849 = vmatpush1.msra.mxu0 0.0
  %850 = vmatprep.subr.mxu0 0.0
  %851 = vmatpush1.msra.mxu0 0.0
  %852 = vmatprep.subr.mxu0 0.0
  %853 = vmatpush1.msra.mxu0 0.0
  %854 = vmatprep.subr.mxu0 0.0
  %855 = vmatpush1.msra.mxu0 0.0
  %856 = vmatprep.subr.mxu0 0.0
  %857 = vmatpush1.msra.mxu0 0.0
  %858 = vmatprep.subr.mxu0 0.0
  %859 = vmatpush1.msra.mxu0 0.0
  %860 = vmatprep.subr.mxu0 0.0
  %861 = vmatpush1.msra.mxu0 0.0
  %862 = vmatprep.subr.mxu0 0.0
  %863 = vmatpush1.msra.mxu0 0.0
  %864 = vmatprep.subr.mxu0 0.0
  %865 = vmatpush1.msra.mxu0 0.0
  %866 = vmatprep.subr.mxu0 0.0
  %867 = vmatpush1.msra.mxu0 0.0
  %868 = vmatprep.subr.mxu0 0.0
  %869 = vmatpush1.msra.mxu0 0.0
  %870 = vmatprep.subr.mxu0 0.0
  %871 = vmatpush1.msra.mxu0 0.0
  %872 = vmatprep.subr.mxu0 0.0
  %873 = vmatpush1.msra.mxu0 0.0
  %874 = vmatprep.subr.mxu0 0.0
  %875 = vmatpush1.msra.mxu0 0.0
  %876 = vmatprep.subr.mxu0 0.0
  %877 = vmatpush1.msra.mxu0 0.0
  %878 = vmatprep.subr.mxu0 0.0
  %879 = vmatpush1.msra.mxu0 0.0
  %880 = vmatprep.subr.mxu0 0.0
  %881 = vmatpush1.msra.mxu0 0.0
  %882 = vmatprep.subr.mxu0 0.0
  %883 = vmatpush1.msra.mxu0 0.0
  %884 = vmatprep.mubr.f32.mxu0 0.0
  %885 = vmatmul.mubr.f32.gmra.mrb[0].mxu0 %v818
  %v886 = vpop.f32.mrb[0].mxu0
  %v887 = vadd.f32 %v815, %v886
  %v888 = vpop.f32.mrb[0].mxu0
  %889 = vdwg.mxu0
  %v890 = vadd.f32 %v887, %v703
  %vm891 = vcmp.gt.f32.partialorder %v890, 0.0
  %v892 = vmin.f32 %v890, 0.0
  %v893 = vmul.f32 %v892, 1.442695
  %v894 = vpow.pop %v893
  %v895 = vsub.f32 %v894, 1.0
  %v896 = vsel %vm891, %v890, %v895
  %v897 = vld [vmem:[%s11] sm:$0xff]
  %v898 = vld [vmem:[%s11 + $0x8] sm:$0xff]
  %v899 = vld [vmem:[%s11 + $0x10] sm:$0xff]
  %v900 = vld [vmem:[%s11 + $0x18] sm:$0xff]
  %v901 = vld [vmem:[%s11 + $0x20] sm:$0xff]
  %v902 = vld [vmem:[%s11 + $0x28] sm:$0xff]
  %v903 = vld [vmem:[%s11 + $0x30] sm:$0xff]
  %v904 = vld [vmem:[%s11 + $0x38] sm:$0xff]
  %v905 = vld [vmem:[%s11 + $0x40] sm:$0xff]
  %v906 = vld [vmem:[%s11 + $0x48] sm:$0xff]
  %v907 = vld [vmem:[%s11 + $0x50] sm:$0xff]
  %v908 = vld [vmem:[%s11 + $0x58] sm:$0xff]
  %v909 = vld [vmem:[%s11 + $0x60] sm:$0xff]
  %v910 = vld [vmem:[%s11 + $0x68] sm:$0xff]
  %v911 = vld [vmem:[%s11 + $0x70] sm:$0xff]
  %v912 = vld [vmem:[%s11 + $0x78] sm:$0xff]
  %v913 = vld [vmem:[%s11 + $0x80] sm:$0xff]
  %v914 = vld [vmem:[%s11 + $0x88] sm:$0xff]
  %v915 = vld [vmem:[%s11 + $0x90] sm:$0xff]
  %v916 = vld [vmem:[%s11 + $0x98] sm:$0xff]
  %v917 = vld [vmem:[%s11 + $0xa0] sm:$0xff]
  %v918 = vld [vmem:[%s11 + $0xa8] sm:$0xff]
  %v919 = vld [vmem:[%s11 + $0xb0] sm:$0xff]
  %v920 = vld [vmem:[%s11 + $0xb8] sm:$0xff]
  %v921 = vld [vmem:[%s11 + $0xc0] sm:$0xff]
  %v922 = vld [vmem:[%s11 + $0xc8] sm:$0xff]
  %v923 = vld [vmem:[%s11 + $0xd0] sm:$0xff]
  %v924 = vld [vmem:[%s11 + $0xd8] sm:$0xff]
  %v925 = vld [vmem:[%s11 + $0xe0] sm:$0xff]
  %v926 = vld [vmem:[%s11 + $0xe8] sm:$0xff]
  %v927 = vld [vmem:[%s11 + $0xf0] sm:$0xff]
  %v928 = vld [vmem:[%s11 + $0xf8] sm:$0xff]
  %v929 = vld [vmem:[%s11 + $0x100] sm:$0xff]
  %v930 = vld [vmem:[%s11 + $0x108] sm:$0xff]
  %v931 = vld [vmem:[%s11 + $0x110] sm:$0xff]
  %v932 = vld [vmem:[%s11 + $0x118] sm:$0xff]
  %v933 = vld [vmem:[%s11 + $0x120] sm:$0xff]
  %v934 = vld [vmem:[%s11 + $0x128] sm:$0xff]
  %v935 = vld [vmem:[%s11 + $0x130] sm:$0xff]
  %v936 = vld [vmem:[%s11 + $0x138] sm:$0xff]
  %v937 = vld [vmem:[%s11 + $0x140] sm:$0xff]
  %v938 = vld [vmem:[%s11 + $0x148] sm:$0xff]
  %v939 = vld [vmem:[%s11 + $0x150] sm:$0xff]
  %v940 = vld [vmem:[%s11 + $0x158] sm:$0xff]
  %v941 = vld [vmem:[%s11 + $0x160] sm:$0xff]
  %v942 = vld [vmem:[%s11 + $0x168] sm:$0xff]
  %v943 = vld [vmem:[%s11 + $0x170] sm:$0xff]
  %v944 = vld [vmem:[%s11 + $0x178] sm:$0xff]
  %v945 = vld [vmem:[%s11 + $0x180] sm:$0xff]
  %v946 = vld [vmem:[%s11 + $0x188] sm:$0xff]
  %v947 = vld [vmem:[%s11 + $0x190] sm:$0xff]
  %v948 = vld [vmem:[%s11 + $0x198] sm:$0xff]
  %v949 = vld [vmem:[%s11 + $0x1a0] sm:$0xff]
  %v950 = vld [vmem:[%s11 + $0x1a8] sm:$0xff]
  %v951 = vld [vmem:[%s11 + $0x1b0] sm:$0xff]
  %v952 = vld [vmem:[%s11 + $0x1b8] sm:$0xff]
  %v953 = vld [vmem:[%s11 + $0x1c0] sm:$0xff]
  %v954 = vld [vmem:[%s11 + $0x1c8] sm:$0xff]
  %v955 = vld [vmem:[%s11 + $0x1d0] sm:$0xff]
  %v956 = vld [vmem:[%s11 + $0x1d8] sm:$0xff]
  %v957 = vld [vmem:[%s11 + $0x1e0] sm:$0xff]
  %v958 = vld [vmem:[%s11 + $0x1e8] sm:$0xff]
  %v959 = vld [vmem:[%s11 + $0x1f0] sm:$0xff]
  %v960 = vld [vmem:[%s11 + $0x1f8] sm:$0xff]
  %v961 = vld [vmem:[%s12] sm:$0xff]
  %v963 = vlaneseq
  %v964 = vshrl.u32 %v963, 7
  %v965 = vsub.s32 0, %v964
  %v966 = vrot.slane %v961, %v965
  %v967 = vlaneseq
  %v968 = vshrl.u32 %v967, 7
  %v969 = vsub.s32 1, %v968
  %v970 = vrot.slane %v961, %v969
  %v971 = vlaneseq
  %v972 = vshrl.u32 %v971, 7
  %v973 = vsub.s32 2, %v972
  %v974 = vrot.slane %v961, %v973
  %v975 = vlaneseq
  %v976 = vshrl.u32 %v975, 7
  %v977 = vsub.s32 3, %v976
  %v978 = vrot.slane %v961, %v977
  %v979 = vlaneseq
  %v980 = vshrl.u32 %v979, 7
  %v981 = vsub.s32 4, %v980
  %v982 = vrot.slane %v961, %v981
  %v983 = vlaneseq
  %v984 = vshrl.u32 %v983, 7
  %v985 = vsub.s32 5, %v984
  %v986 = vrot.slane %v961, %v985
  %v987 = vlaneseq
  %v988 = vshrl.u32 %v987, 7
  %v989 = vsub.s32 6, %v988
  %v990 = vrot.slane %v961, %v989
  %v991 = vlaneseq
  %v992 = vshrl.u32 %v991, 7
  %v993 = vsub.s32 7, %v992
  %v994 = vrot.slane %v961, %v993
  %v1004 = vsel %vm160, %v896, 0
  %1006 = vmatprep.subr.mxu0 %v898
  %1007 = vmatpush1.msra.mxu0 %v897
  %1008 = vmatprep.subr.mxu0 %v906
  %1009 = vmatpush1.msra.mxu0 %v905
  %1010 = vmatprep.subr.mxu0 %v914
  %1011 = vmatpush1.msra.mxu0 %v913
  %1012 = vmatprep.subr.mxu0 %v922
  %1013 = vmatpush1.msra.mxu0 %v921
  %1014 = vmatprep.subr.mxu0 %v930
  %1015 = vmatpush1.msra.mxu0 %v929
  %1016 = vmatprep.subr.mxu0 %v938
  %1017 = vmatpush1.msra.mxu0 %v937
  %1018 = vmatprep.subr.mxu0 %v946
  %1019 = vmatpush1.msra.mxu0 %v945
  %1020 = vmatprep.subr.mxu0 %v954
  %1021 = vmatpush1.msra.mxu0 %v953
  %1022 = vmatprep.subr.mxu0 0.0
  %1023 = vmatpush1.msra.mxu0 0.0
  %1024 = vmatprep.subr.mxu0 0.0
  %1025 = vmatpush1.msra.mxu0 0.0
  %1026 = vmatprep.subr.mxu0 0.0
  %1027 = vmatpush1.msra.mxu0 0.0
  %1028 = vmatprep.subr.mxu0 0.0
  %1029 = vmatpush1.msra.mxu0 0.0
  %1030 = vmatprep.subr.mxu0 0.0
  %1031 = vmatpush1.msra.mxu0 0.0
  %1032 = vmatprep.subr.mxu0 0.0
  %1033 = vmatpush1.msra.mxu0 0.0
  %1034 = vmatprep.subr.mxu0 0.0
  %1035 = vmatpush1.msra.mxu0 0.0
  %1036 = vmatprep.subr.mxu0 0.0
  %1037 = vmatpush1.msra.mxu0 0.0
  %1038 = vmatprep.subr.mxu0 0.0
  %1039 = vmatpush1.msra.mxu0 0.0
  %1040 = vmatprep.subr.mxu0 0.0
  %1041 = vmatpush1.msra.mxu0 0.0
  %1042 = vmatprep.subr.mxu0 0.0
  %1043 = vmatpush1.msra.mxu0 0.0
  %1044 = vmatprep.subr.mxu0 0.0
  %1045 = vmatpush1.msra.mxu0 0.0
  %1046 = vmatprep.subr.mxu0 0.0
  %1047 = vmatpush1.msra.mxu0 0.0
  %1048 = vmatprep.subr.mxu0 0.0
  %1049 = vmatpush1.msra.mxu0 0.0
  %1050 = vmatprep.subr.mxu0 0.0
  %1051 = vmatpush1.msra.mxu0 0.0
  %1052 = vmatprep.subr.mxu0 0.0
  %1053 = vmatpush1.msra.mxu0 0.0
  %1054 = vmatprep.subr.mxu0 0.0
  %1055 = vmatpush1.msra.mxu0 0.0
  %1056 = vmatprep.subr.mxu0 0.0
  %1057 = vmatpush1.msra.mxu0 0.0
  %1058 = vmatprep.subr.mxu0 0.0
  %1059 = vmatpush1.msra.mxu0 0.0
  %1060 = vmatprep.subr.mxu0 0.0
  %1061 = vmatpush1.msra.mxu0 0.0
  %1062 = vmatprep.subr.mxu0 0.0
  %1063 = vmatpush1.msra.mxu0 0.0
  %1064 = vmatprep.subr.mxu0 0.0
  %1065 = vmatpush1.msra.mxu0 0.0
  %1066 = vmatprep.subr.mxu0 0.0
  %1067 = vmatpush1.msra.mxu0 0.0
  %1068 = vmatprep.subr.mxu0 0.0
  %1069 = vmatpush1.msra.mxu0 0.0
  %1070 = vmatprep.mubr.f32.mxu0 0.0
  %1071 = vmatmul.mubr.f32.gmra.mrb[0].mxu0 %v1004
  %v1072 = vpop.f32.mrb[0].mxu0
  %v1073 = vadd.f32 %v966, %v1072
  %v1074 = vpop.f32.mrb[0].mxu0
  %v1075 = vadd.f32 %v970, %v1074
  %1076 = vdwg.mxu0
  %1077 = vmatprep.subr.mxu0 %v900
  %1078 = vmatpush1.msra.mxu0 %v899
  %1079 = vmatprep.subr.mxu0 %v908
  %1080 = vmatpush1.msra.mxu0 %v907
  %1081 = vmatprep.subr.mxu0 %v916
  %1082 = vmatpush1.msra.mxu0 %v915
  %1083 = vmatprep.subr.mxu0 %v924
  %1084 = vmatpush1.msra.mxu0 %v923
  %1085 = vmatprep.subr.mxu0 %v932
  %1086 = vmatpush1.msra.mxu0 %v931
  %1087 = vmatprep.subr.mxu0 %v940
  %1088 = vmatpush1.msra.mxu0 %v939
  %1089 = vmatprep.subr.mxu0 %v948
  %1090 = vmatpush1.msra.mxu0 %v947
  %1091 = vmatprep.subr.mxu0 %v956
  %1092 = vmatpush1.msra.mxu0 %v955
  %1093 = vmatprep.subr.mxu0 0.0
  %1094 = vmatpush1.msra.mxu0 0.0
  %1095 = vmatprep.subr.mxu0 0.0
  %1096 = vmatpush1.msra.mxu0 0.0
  %1097 = vmatprep.subr.mxu0 0.0
  %1098 = vmatpush1.msra.mxu0 0.0
  %1099 = vmatprep.subr.mxu0 0.0
  %1100 = vmatpush1.msra.mxu0 0.0
  %1101 = vmatprep.subr.mxu0 0.0
  %1102 = vmatpush1.msra.mxu0 0.0
  %1103 = vmatprep.subr.mxu0 0.0
  %1104 = vmatpush1.msra.mxu0 0.0
  %1105 = vmatprep.subr.mxu0 0.0
  %1106 = vmatpush1.msra.mxu0 0.0
  %1107 = vmatprep.subr.mxu0 0.0
  %1108 = vmatpush1.msra.mxu0 0.0
  %1109 = vmatprep.subr.mxu0 0.0
  %1110 = vmatpush1.msra.mxu0 0.0
  %1111 = vmatprep.subr.mxu0 0.0
  %1112 = vmatpush1.msra.mxu0 0.0
  %1113 = vmatprep.subr.mxu0 0.0
  %1114 = vmatpush1.msra.mxu0 0.0
  %1115 = vmatprep.subr.mxu0 0.0
  %1116 = vmatpush1.msra.mxu0 0.0
  %1117 = vmatprep.subr.mxu0 0.0
  %1118 = vmatpush1.msra.mxu0 0.0
  %1119 = vmatprep.subr.mxu0 0.0
  %1120 = vmatpush1.msra.mxu0 0.0
  %1121 = vmatprep.subr.mxu0 0.0
  %1122 = vmatpush1.msra.mxu0 0.0
  %1123 = vmatprep.subr.mxu0 0.0
  %1124 = vmatpush1.msra.mxu0 0.0
  %1125 = vmatprep.subr.mxu0 0.0
  %1126 = vmatpush1.msra.mxu0 0.0
  %1127 = vmatprep.subr.mxu0 0.0
  %1128 = vmatpush1.msra.mxu0 0.0
  %1129 = vmatprep.subr.mxu0 0.0
  %1130 = vmatpush1.msra.mxu0 0.0
  %1131 = vmatprep.subr.mxu0 0.0
  %1132 = vmatpush1.msra.mxu0 0.0
  %1133 = vmatprep.subr.mxu0 0.0
  %1134 = vmatpush1.msra.mxu0 0.0
  %1135 = vmatprep.subr.mxu0 0.0
  %1136 = vmatpush1.msra.mxu0 0.0
  %1137 = vmatprep.subr.mxu0 0.0
  %1138 = vmatpush1.msra.mxu0 0.0
  %1139 = vmatprep.subr.mxu0 0.0
  %1140 = vmatpush1.msra.mxu0 0.0
  %1141 = vmatprep.mubr.f32.mxu0 0.0
  %1142 = vmatmul.mubr.f32.gmra.mrb[0].mxu0 %v1004
  %v1143 = vpop.f32.mrb[0].mxu0
  %v1144 = vadd.f32 %v974, %v1143
  %v1145 = vpop.f32.mrb[0].mxu0
  %v1146 = vadd.f32 %v978, %v1145
  %1147 = vdwg.mxu0
  %1148 = vmatprep.subr.mxu0 %v902
  %1149 = vmatpush1.msra.mxu0 %v901
  %1150 = vmatprep.subr.mxu0 %v910
  %1151 = vmatpush1.msra.mxu0 %v909
  %1152 = vmatprep.subr.mxu0 %v918
  %1153 = vmatpush1.msra.mxu0 %v917
  %1154 = vmatprep.subr.mxu0 %v926
  %1155 = vmatpush1.msra.mxu0 %v925
  %1156 = vmatprep.subr.mxu0 %v934
  %1157 = vmatpush1.msra.mxu0 %v933
  %1158 = vmatprep.subr.mxu0 %v942
  %1159 = vmatpush1.msra.mxu0 %v941
  %1160 = vmatprep.subr.mxu0 %v950
  %1161 = vmatpush1.msra.mxu0 %v949
  %1162 = vmatprep.subr.mxu0 %v958
  %1163 = vmatpush1.msra.mxu0 %v957
  %1164 = vmatprep.subr.mxu0 0.0
  %1165 = vmatpush1.msra.mxu0 0.0
  %1166 = vmatprep.subr.mxu0 0.0
  %1167 = vmatpush1.msra.mxu0 0.0
  %1168 = vmatprep.subr.mxu0 0.0
  %1169 = vmatpush1.msra.mxu0 0.0
  %1170 = vmatprep.subr.mxu0 0.0
  %1171 = vmatpush1.msra.mxu0 0.0
  %1172 = vmatprep.subr.mxu0 0.0
  %1173 = vmatpush1.msra.mxu0 0.0
  %1174 = vmatprep.subr.mxu0 0.0
  %1175 = vmatpush1.msra.mxu0 0.0
  %1176 = vmatprep.subr.mxu0 0.0
  %1177 = vmatpush1.msra.mxu0 0.0
  %1178 = vmatprep.subr.mxu0 0.0
  %1179 = vmatpush1.msra.mxu0 0.0
  %1180 = vmatprep.subr.mxu0 0.0
  %1181 = vmatpush1.msra.mxu0 0.0
  %1182 = vmatprep.subr.mxu0 0.0
  %1183 = vmatpush1.msra.mxu0 0.0
  %1184 = vmatprep.subr.mxu0 0.0
  %1185 = vmatpush1.msra.mxu0 0.0
  %1186 = vmatprep.subr.mxu0 0.0
  %1187 = vmatpush1.msra.mxu0 0.0
  %1188 = vmatprep.subr.mxu0 0.0
  %1189 = vmatpush1.msra.mxu0 0.0
  %1190 = vmatprep.subr.mxu0 0.0
  %1191 = vmatpush1.msra.mxu0 0.0
  %1192 = vmatprep.subr.mxu0 0.0
  %1193 = vmatpush1.msra.mxu0 0.0
  %1194 = vmatprep.subr.mxu0 0.0
  %1195 = vmatpush1.msra.mxu0 0.0
  %1196 = vmatprep.subr.mxu0 0.0
  %1197 = vmatpush1.msra.mxu0 0.0
  %1198 = vmatprep.subr.mxu0 0.0
  %1199 = vmatpush1.msra.mxu0 0.0
  %1200 = vmatprep.subr.mxu0 0.0
  %1201 = vmatpush1.msra.mxu0 0.0
  %1202 = vmatprep.subr.mxu0 0.0
  %1203 = vmatpush1.msra.mxu0 0.0
  %1204 = vmatprep.subr.mxu0 0.0
  %1205 = vmatpush1.msra.mxu0 0.0
  %1206 = vmatprep.subr.mxu0 0.0
  %1207 = vmatpush1.msra.mxu0 0.0
  %1208 = vmatprep.subr.mxu0 0.0
  %1209 = vmatpush1.msra.mxu0 0.0
  %1210 = vmatprep.subr.mxu0 0.0
  %1211 = vmatpush1.msra.mxu0 0.0
  %1212 = vmatprep.mubr.f32.mxu0 0.0
  %1213 = vmatmul.mubr.f32.gmra.mrb[0].mxu0 %v1004
  %v1214 = vpop.f32.mrb[0].mxu0
  %v1215 = vadd.f32 %v982, %v1214
  %v1216 = vpop.f32.mrb[0].mxu0
  %v1217 = vadd.f32 %v986, %v1216
  %1218 = vdwg.mxu0
  %1219 = vmatprep.subr.mxu0 %v904
  %1220 = vmatpush1.msra.mxu0 %v903
  %1221 = vmatprep.subr.mxu0 %v912
  %1222 = vmatpush1.msra.mxu0 %v911
  %1223 = vmatprep.subr.mxu0 %v920
  %1224 = vmatpush1.msra.mxu0 %v919
  %1225 = vmatprep.subr.mxu0 %v928
  %1226 = vmatpush1.msra.mxu0 %v927
  %1227 = vmatprep.subr.mxu0 %v936
  %1228 = vmatpush1.msra.mxu0 %v935
  %1229 = vmatprep.subr.mxu0 %v944
  %1230 = vmatpush1.msra.mxu0 %v943
  %1231 = vmatprep.subr.mxu0 %v952
  %1232 = vmatpush1.msra.mxu0 %v951
  %1233 = vmatprep.subr.mxu0 %v960
  %1234 = vmatpush1.msra.mxu0 %v959
  %1235 = vmatprep.subr.mxu0 0.0
  %1236 = vmatpush1.msra.mxu0 0.0
  %1237 = vmatprep.subr.mxu0 0.0
  %1238 = vmatpush1.msra.mxu0 0.0
  %1239 = vmatprep.subr.mxu0 0.0
  %1240 = vmatpush1.msra.mxu0 0.0
  %1241 = vmatprep.subr.mxu0 0.0
  %1242 = vmatpush1.msra.mxu0 0.0
  %1243 = vmatprep.subr.mxu0 0.0
  %1244 = vmatpush1.msra.mxu0 0.0
  %1245 = vmatprep.subr.mxu0 0.0
  %1246 = vmatpush1.msra.mxu0 0.0
  %1247 = vmatprep.subr.mxu0 0.0
  %1248 = vmatpush1.msra.mxu0 0.0
  %1249 = vmatprep.subr.mxu0 0.0
  %1250 = vmatpush1.msra.mxu0 0.0
  %1251 = vmatprep.subr.mxu0 0.0
  %1252 = vmatpush1.msra.mxu0 0.0
  %1253 = vmatprep.subr.mxu0 0.0
  %1254 = vmatpush1.msra.mxu0 0.0
  %1255 = vmatprep.subr.mxu0 0.0
  %1256 = vmatpush1.msra.mxu0 0.0
  %1257 = vmatprep.subr.mxu0 0.0
  %1258 = vmatpush1.msra.mxu0 0.0
  %1259 = vmatprep.subr.mxu0 0.0
  %1260 = vmatpush1.msra.mxu0 0.0
  %1261 = vmatprep.subr.mxu0 0.0
  %1262 = vmatpush1.msra.mxu0 0.0
  %1263 = vmatprep.subr.mxu0 0.0
  %1264 = vmatpush1.msra.mxu0 0.0
  %1265 = vmatprep.subr.mxu0 0.0
  %1266 = vmatpush1.msra.mxu0 0.0
  %1267 = vmatprep.subr.mxu0 0.0
  %1268 = vmatpush1.msra.mxu0 0.0
  %1269 = vmatprep.subr.mxu0 0.0
  %1270 = vmatpush1.msra.mxu0 0.0
  %1271 = vmatprep.subr.mxu0 0.0
  %1272 = vmatpush1.msra.mxu0 0.0
  %1273 = vmatprep.subr.mxu0 0.0
  %1274 = vmatpush1.msra.mxu0 0.0
  %1275 = vmatprep.subr.mxu0 0.0
  %1276 = vmatpush1.msra.mxu0 0.0
  %1277 = vmatprep.subr.mxu0 0.0
  %1278 = vmatpush1.msra.mxu0 0.0
  %1279 = vmatprep.subr.mxu0 0.0
  %1280 = vmatpush1.msra.mxu0 0.0
  %1281 = vmatprep.subr.mxu0 0.0
  %1282 = vmatpush1.msra.mxu0 0.0
  %1283 = vmatprep.mubr.f32.mxu0 0.0
  %1284 = vmatmul.mubr.f32.gmra.mrb[0].mxu0 %v1004
  %v1285 = vpop.f32.mrb[0].mxu0
  %v1286 = vadd.f32 %v990, %v1285
  %v1287 = vpop.f32.mrb[0].mxu0
  %v1288 = vadd.f32 %v994, %v1287
  %1289 = vdwg.mxu0
  %v1290 = vld [vmem:[%s13] sm:$0xff]
  %v1291 = vld [vmem:[%s13 + $0x8] sm:$0xff]
  %v1292 = vld [vmem:[%s13 + $0x10] sm:$0xff]
  %v1293 = vld [vmem:[%s13 + $0x18] sm:$0xff]
  %v1295 = vsel %vm65, 0.0, 0
  %1297 = vmatprep.subr.mxu0 0.0
  %1298 = vmatpush1.msra.mxu0 %v1290
  %1299 = vmatprep.subr.mxu0 0.0
  %1300 = vmatpush1.msra.mxu0 %v1291
  %1301 = vmatprep.subr.mxu0 0.0
  %1302 = vmatpush1.msra.mxu0 %v1292
  %1303 = vmatprep.subr.mxu0 0.0
  %1304 = vmatpush1.msra.mxu0 %v1293
  %1305 = vmatprep.subr.mxu0 0.0
  %1306 = vmatpush1.msra.mxu0 0.0
  %1307 = vmatprep.subr.mxu0 0.0
  %1308 = vmatpush1.msra.mxu0 0.0
  %1309 = vmatprep.subr.mxu0 0.0
  %1310 = vmatpush1.msra.mxu0 0.0
  %1311 = vmatprep.subr.mxu0 0.0
  %1312 = vmatpush1.msra.mxu0 0.0
  %1313 = vmatprep.subr.mxu0 0.0
  %1314 = vmatpush1.msra.mxu0 0.0
  %1315 = vmatprep.subr.mxu0 0.0
  %1316 = vmatpush1.msra.mxu0 0.0
  %1317 = vmatprep.subr.mxu0 0.0
  %1318 = vmatpush1.msra.mxu0 0.0
  %1319 = vmatprep.subr.mxu0 0.0
  %1320 = vmatpush1.msra.mxu0 0.0
  %1321 = vmatprep.subr.mxu0 0.0
  %1322 = vmatpush1.msra.mxu0 0.0
  %1323 = vmatprep.subr.mxu0 0.0
  %1324 = vmatpush1.msra.mxu0 0.0
  %1325 = vmatprep.subr.mxu0 0.0
  %1326 = vmatpush1.msra.mxu0 0.0
  %1327 = vmatprep.subr.mxu0 0.0
  %1328 = vmatpush1.msra.mxu0 0.0
  %1329 = vmatprep.subr.mxu0 0.0
  %1330 = vmatpush1.msra.mxu0 0.0
  %1331 = vmatprep.subr.mxu0 0.0
  %1332 = vmatpush1.msra.mxu0 0.0
  %1333 = vmatprep.subr.mxu0 0.0
  %1334 = vmatpush1.msra.mxu0 0.0
  %1335 = vmatprep.subr.mxu0 0.0
  %1336 = vmatpush1.msra.mxu0 0.0
  %1337 = vmatprep.subr.mxu0 0.0
  %1338 = vmatpush1.msra.mxu0 0.0
  %1339 = vmatprep.subr.mxu0 0.0
  %1340 = vmatpush1.msra.mxu0 0.0
  %1341 = vmatprep.subr.mxu0 0.0
  %1342 = vmatpush1.msra.mxu0 0.0
  %1343 = vmatprep.subr.mxu0 0.0
  %1344 = vmatpush1.msra.mxu0 0.0
  %1345 = vmatprep.subr.mxu0 0.0
  %1346 = vmatpush1.msra.mxu0 0.0
  %1347 = vmatprep.subr.mxu0 0.0
  %1348 = vmatpush1.msra.mxu0 0.0
  %1349 = vmatprep.subr.mxu0 0.0
  %1350 = vmatpush1.msra.mxu0 0.0
  %1351 = vmatprep.subr.mxu0 0.0
  %1352 = vmatpush1.msra.mxu0 0.0
  %1353 = vmatprep.subr.mxu0 0.0
  %1354 = vmatpush1.msra.mxu0 0.0
  %1355 = vmatprep.subr.mxu0 0.0
  %1356 = vmatpush1.msra.mxu0 0.0
  %1357 = vmatprep.subr.mxu0 0.0
  %1358 = vmatpush1.msra.mxu0 0.0
  %1359 = vmatprep.subr.mxu0 0.0
  %1360 = vmatpush1.msra.mxu0 0.0
  %1361 = vmatprep.mubr.f32.mxu0 0.0
  %1362 = vmatmul.mubr.f32.gmra.mrb[0].mxu0 %v1295
  %v1363 = vpop.f32.mrb[0].mxu0
  %v1364 = vadd.f32 0.0, %v1363
  %v1365 = vpop.f32.mrb[0].mxu0
  %1366 = vdwg.mxu0
  %v1367 = vadd.f32 %v1073, %v1364
  %v1368 = vxor.u32 %v1367, 2147483648
  %v1369 = vmul.f32 %v1368, 1.442695
  %v1370 = vpow.pop %v1369
  %v1371 = vadd.f32 %v1370, 1.0
  %v1372 = vrcp.pop %v1371
  %v1373 = vmul.f32 1.0, %v1372
  %v1374 = vtanh.pop %v1367
  %v1375 = vmul.f32 %v1373, 0.0
  %1377 = vrot.lane.b32.xlu0 %v1374, 64
  %v1378 = vpop.permute.xlu0 %1377
  %v1380 = vmul.f32 %v1373, %v1378
  %1382 = vrot.lane.b32.xlu0 %v1380, 32
  %v1383 = vpop.permute.xlu0 %1382
  %v1385 = vadd.f32 %v1375, %v1383
  %v1386 = vtanh.pop %v1385
  %1388 = vrot.lane.b32.xlu0 %v1386, 64
  %v1389 = vpop.permute.xlu0 %1388
  %v1391 = vmul.f32 %v1373, %v1389
  %1393 = vrot.lane.b32.xlu0 %v1391, 32
  %v1394 = vpop.permute.xlu0 %1393
  %v1395 = vsel %vm65, %v1394, 0
  %1397 = vmatprep.subr.mxu0 0.0
  %1398 = vmatpush1.msra.mxu0 %v1290
  %1399 = vmatprep.subr.mxu0 0.0
  %1400 = vmatpush1.msra.mxu0 %v1291
  %1401 = vmatprep.subr.mxu0 0.0
  %1402 = vmatpush1.msra.mxu0 %v1292
  %1403 = vmatprep.subr.mxu0 0.0
  %1404 = vmatpush1.msra.mxu0 %v1293
  %1405 = vmatprep.subr.mxu0 0.0
  %1406 = vmatpush1.msra.mxu0 0.0
  %1407 = vmatprep.subr.mxu0 0.0
  %1408 = vmatpush1.msra.mxu0 0.0
  %1409 = vmatprep.subr.mxu0 0.0
  %1410 = vmatpush1.msra.mxu0 0.0
  %1411 = vmatprep.subr.mxu0 0.0
  %1412 = vmatpush1.msra.mxu0 0.0
  %1413 = vmatprep.subr.mxu0 0.0
  %1414 = vmatpush1.msra.mxu0 0.0
  %1415 = vmatprep.subr.mxu0 0.0
  %1416 = vmatpush1.msra.mxu0 0.0
  %1417 = vmatprep.subr.mxu0 0.0
  %1418 = vmatpush1.msra.mxu0 0.0
  %1419 = vmatprep.subr.mxu0 0.0
  %1420 = vmatpush1.msra.mxu0 0.0
  %1421 = vmatprep.subr.mxu0 0.0
  %1422 = vmatpush1.msra.mxu0 0.0
  %1423 = vmatprep.subr.mxu0 0.0
  %1424 = vmatpush1.msra.mxu0 0.0
  %1425 = vmatprep.subr.mxu0 0.0
  %1426 = vmatpush1.msra.mxu0 0.0
  %1427 = vmatprep.subr.mxu0 0.0
  %1428 = vmatpush1.msra.mxu0 0.0
  %1429 = vmatprep.subr.mxu0 0.0
  %1430 = vmatpush1.msra.mxu0 0.0
  %1431 = vmatprep.subr.mxu0 0.0
  %1432 = vmatpush1.msra.mxu0 0.0
  %1433 = vmatprep.subr.mxu0 0.0
  %1434 = vmatpush1.msra.mxu0 0.0
  %1435 = vmatprep.subr.mxu0 0.0
  %1436 = vmatpush1.msra.mxu0 0.0
  %1437 = vmatprep.subr.mxu0 0.0
  %1438 = vmatpush1.msra.mxu0 0.0
  %1439 = vmatprep.subr.mxu0 0.0
  %1440 = vmatpush1.msra.mxu0 0.0
  %1441 = vmatprep.subr.mxu0 0.0
  %1442 = vmatpush1.msra.mxu0 0.0
  %1443 = vmatprep.subr.mxu0 0.0
  %1444 = vmatpush1.msra.mxu0 0.0
  %1445 = vmatprep.subr.mxu0 0.0
  %1446 = vmatpush1.msra.mxu0 0.0
  %1447 = vmatprep.subr.mxu0 0.0
  %1448 = vmatpush1.msra.mxu0 0.0
  %1449 = vmatprep.subr.mxu0 0.0
  %1450 = vmatpush1.msra.mxu0 0.0
  %1451 = vmatprep.subr.mxu0 0.0
  %1452 = vmatpush1.msra.mxu0 0.0
  %1453 = vmatprep.subr.mxu0 0.0
  %1454 = vmatpush1.msra.mxu0 0.0
  %1455 = vmatprep.subr.mxu0 0.0
  %1456 = vmatpush1.msra.mxu0 0.0
  %1457 = vmatprep.subr.mxu0 0.0
  %1458 = vmatpush1.msra.mxu0 0.0
  %1459 = vmatprep.subr.mxu0 0.0
  %1460 = vmatpush1.msra.mxu0 0.0
  %1461 = vmatprep.mubr.f32.mxu0 0.0
  %1462 = vmatmul.mubr.f32.gmra.mrb[0].mxu0 %v1395
  %v1463 = vpop.f32.mrb[0].mxu0
  %v1464 = vadd.f32 0.0, %v1463
  %v1465 = vpop.f32.mrb[0].mxu0
  %1466 = vdwg.mxu0
  %v1467 = vadd.f32 %v1075, %v1464
  %v1468 = vxor.u32 %v1467, 2147483648
  %v1469 = vmul.f32 %v1468, 1.442695
  %v1470 = vpow.pop %v1469
  %v1471 = vadd.f32 %v1470, 1.0
  %v1472 = vrcp.pop %v1471
  %v1473 = vmul.f32 1.0, %v1472
  %v1474 = vtanh.pop %v1467
  %v1475 = vmul.f32 %v1473, %v1385
  %1477 = vrot.lane.b32.xlu0 %v1474, 64
  %v1478 = vpop.permute.xlu0 %1477
  %v1480 = vmul.f32 %v1473, %v1478
  %1482 = vrot.lane.b32.xlu0 %v1480, 32
  %v1483 = vpop.permute.xlu0 %1482
  %v1485 = vadd.f32 %v1475, %v1483
  %v1486 = vtanh.pop %v1485
  %1488 = vrot.lane.b32.xlu0 %v1486, 64
  %v1489 = vpop.permute.xlu0 %1488
  %v1491 = vmul.f32 %v1473, %v1489
  %1493 = vrot.lane.b32.xlu0 %v1491, 32
  %v1494 = vpop.permute.xlu0 %1493
  %v1495 = vsel %vm65, %v1494, 0
  %1497 = vmatprep.subr.mxu0 0.0
  %1498 = vmatpush1.msra.mxu0 %v1290
  %1499 = vmatprep.subr.mxu0 0.0
  %1500 = vmatpush1.msra.mxu0 %v1291
  %1501 = vmatprep.subr.mxu0 0.0
  %1502 = vmatpush1.msra.mxu0 %v1292
  %1503 = vmatprep.subr.mxu0 0.0
  %1504 = vmatpush1.msra.mxu0 %v1293
  %1505 = vmatprep.subr.mxu0 0.0
  %1506 = vmatpush1.msra.mxu0 0.0
  %1507 = vmatprep.subr.mxu0 0.0
  %1508 = vmatpush1.msra.mxu0 0.0
  %1509 = vmatprep.subr.mxu0 0.0
  %1510 = vmatpush1.msra.mxu0 0.0
  %1511 = vmatprep.subr.mxu0 0.0
  %1512 = vmatpush1.msra.mxu0 0.0
  %1513 = vmatprep.subr.mxu0 0.0
  %1514 = vmatpush1.msra.mxu0 0.0
  %1515 = vmatprep.subr.mxu0 0.0
  %1516 = vmatpush1.msra.mxu0 0.0
  %1517 = vmatprep.subr.mxu0 0.0
  %1518 = vmatpush1.msra.mxu0 0.0
  %1519 = vmatprep.subr.mxu0 0.0
  %1520 = vmatpush1.msra.mxu0 0.0
  %1521 = vmatprep.subr.mxu0 0.0
  %1522 = vmatpush1.msra.mxu0 0.0
  %1523 = vmatprep.subr.mxu0 0.0
  %1524 = vmatpush1.msra.mxu0 0.0
  %1525 = vmatprep.subr.mxu0 0.0
  %1526 = vmatpush1.msra.mxu0 0.0
  %1527 = vmatprep.subr.mxu0 0.0
  %1528 = vmatpush1.msra.mxu0 0.0
  %1529 = vmatprep.subr.mxu0 0.0
  %1530 = vmatpush1.msra.mxu0 0.0
  %1531 = vmatprep.subr.mxu0 0.0
  %1532 = vmatpush1.msra.mxu0 0.0
  %1533 = vmatprep.subr.mxu0 0.0
  %1534 = vmatpush1.msra.mxu0 0.0
  %1535 = vmatprep.subr.mxu0 0.0
  %1536 = vmatpush1.msra.mxu0 0.0
  %1537 = vmatprep.subr.mxu0 0.0
  %1538 = vmatpush1.msra.mxu0 0.0
  %1539 = vmatprep.subr.mxu0 0.0
  %1540 = vmatpush1.msra.mxu0 0.0
  %1541 = vmatprep.subr.mxu0 0.0
  %1542 = vmatpush1.msra.mxu0 0.0
  %1543 = vmatprep.subr.mxu0 0.0
  %1544 = vmatpush1.msra.mxu0 0.0
  %1545 = vmatprep.subr.mxu0 0.0
  %1546 = vmatpush1.msra.mxu0 0.0
  %1547 = vmatprep.subr.mxu0 0.0
  %1548 = vmatpush1.msra.mxu0 0.0
  %1549 = vmatprep.subr.mxu0 0.0
  %1550 = vmatpush1.msra.mxu0 0.0
  %1551 = vmatprep.subr.mxu0 0.0
  %1552 = vmatpush1.msra.mxu0 0.0
  %1553 = vmatprep.subr.mxu0 0.0
  %1554 = vmatpush1.msra.mxu0 0.0
  %1555 = vmatprep.subr.mxu0 0.0
  %1556 = vmatpush1.msra.mxu0 0.0
  %1557 = vmatprep.subr.mxu0 0.0
  %1558 = vmatpush1.msra.mxu0 0.0
  %1559 = vmatprep.subr.mxu0 0.0
  %1560 = vmatpush1.msra.mxu0 0.0
  %1561 = vmatprep.mubr.f32.mxu0 0.0
  %1562 = vmatmul.mubr.f32.gmra.mrb[0].mxu0 %v1495
  %v1563 = vpop.f32.mrb[0].mxu0
  %v1564 = vadd.f32 0.0, %v1563
  %v1565 = vpop.f32.mrb[0].mxu0
  %1566 = vdwg.mxu0
  %v1567 = vadd.f32 %v1144, %v1564
  %v1568 = vxor.u32 %v1567, 2147483648
  %v1569 = vmul.f32 %v1568, 1.442695
  %v1570 = vpow.pop %v1569
  %v1571 = vadd.f32 %v1570, 1.0
  %v1572 = vrcp.pop %v1571
  %v1573 = vmul.f32 1.0, %v1572
  %v1574 = vtanh.pop %v1567
  %v1575 = vmul.f32 %v1573, %v1485
  %1577 = vrot.lane.b32.xlu0 %v1574, 64
  %v1578 = vpop.permute.xlu0 %1577
  %v1580 = vmul.f32 %v1573, %v1578
  %1582 = vrot.lane.b32.xlu0 %v1580, 32
  %v1583 = vpop.permute.xlu0 %1582
  %v1585 = vadd.f32 %v1575, %v1583
  %v1586 = vtanh.pop %v1585
  %1588 = vrot.lane.b32.xlu0 %v1586, 64
  %v1589 = vpop.permute.xlu0 %1588
  %v1591 = vmul.f32 %v1573, %v1589
  %1593 = vrot.lane.b32.xlu0 %v1591, 32
  %v1594 = vpop.permute.xlu0 %1593
  %v1595 = vsel %vm65, %v1594, 0
  %1597 = vmatprep.subr.mxu0 0.0
  %1598 = vmatpush1.msra.mxu0 %v1290
  %1599 = vmatprep.subr.mxu0 0.0
  %1600 = vmatpush1.msra.mxu0 %v1291
  %1601 = vmatprep.subr.mxu0 0.0
  %1602 = vmatpush1.msra.mxu0 %v1292
  %1603 = vmatprep.subr.mxu0 0.0
  %1604 = vmatpush1.msra.mxu0 %v1293
  %1605 = vmatprep.subr.mxu0 0.0
  %1606 = vmatpush1.msra.mxu0 0.0
  %1607 = vmatprep.subr.mxu0 0.0
  %1608 = vmatpush1.msra.mxu0 0.0
  %1609 = vmatprep.subr.mxu0 0.0
  %1610 = vmatpush1.msra.mxu0 0.0
  %1611 = vmatprep.subr.mxu0 0.0
  %1612 = vmatpush1.msra.mxu0 0.0
  %1613 = vmatprep.subr.mxu0 0.0
  %1614 = vmatpush1.msra.mxu0 0.0
  %1615 = vmatprep.subr.mxu0 0.0
  %1616 = vmatpush1.msra.mxu0 0.0
  %1617 = vmatprep.subr.mxu0 0.0
  %1618 = vmatpush1.msra.mxu0 0.0
  %1619 = vmatprep.subr.mxu0 0.0
  %1620 = vmatpush1.msra.mxu0 0.0
  %1621 = vmatprep.subr.mxu0 0.0
  %1622 = vmatpush1.msra.mxu0 0.0
  %1623 = vmatprep.subr.mxu0 0.0
  %1624 = vmatpush1.msra.mxu0 0.0
  %1625 = vmatprep.subr.mxu0 0.0
  %1626 = vmatpush1.msra.mxu0 0.0
  %1627 = vmatprep.subr.mxu0 0.0
  %1628 = vmatpush1.msra.mxu0 0.0
  %1629 = vmatprep.subr.mxu0 0.0
  %1630 = vmatpush1.msra.mxu0 0.0
  %1631 = vmatprep.subr.mxu0 0.0
  %1632 = vmatpush1.msra.mxu0 0.0
  %1633 = vmatprep.subr.mxu0 0.0
  %1634 = vmatpush1.msra.mxu0 0.0
  %1635 = vmatprep.subr.mxu0 0.0
  %1636 = vmatpush1.msra.mxu0 0.0
  %1637 = vmatprep.subr.mxu0 0.0
  %1638 = vmatpush1.msra.mxu0 0.0
  %1639 = vmatprep.subr.mxu0 0.0
  %1640 = vmatpush1.msra.mxu0 0.0
  %1641 = vmatprep.subr.mxu0 0.0
  %1642 = vmatpush1.msra.mxu0 0.0
  %1643 = vmatprep.subr.mxu0 0.0
  %1644 = vmatpush1.msra.mxu0 0.0
  %1645 = vmatprep.subr.mxu0 0.0
  %1646 = vmatpush1.msra.mxu0 0.0
  %1647 = vmatprep.subr.mxu0 0.0
  %1648 = vmatpush1.msra.mxu0 0.0
  %1649 = vmatprep.subr.mxu0 0.0
  %1650 = vmatpush1.msra.mxu0 0.0
  %1651 = vmatprep.subr.mxu0 0.0
  %1652 = vmatpush1.msra.mxu0 0.0
  %1653 = vmatprep.subr.mxu0 0.0
  %1654 = vmatpush1.msra.mxu0 0.0
  %1655 = vmatprep.subr.mxu0 0.0
  %1656 = vmatpush1.msra.mxu0 0.0
  %1657 = vmatprep.subr.mxu0 0.0
  %1658 = vmatpush1.msra.mxu0 0.0
  %1659 = vmatprep.subr.mxu0 0.0
  %1660 = vmatpush1.msra.mxu0 0.0
  %1661 = vmatprep.mubr.f32.mxu0 0.0
  %1662 = vmatmul.mubr.f32.gmra.mrb[0].mxu0 %v1595
  %v1663 = vpop.f32.mrb[0].mxu0
  %v1664 = vadd.f32 0.0, %v1663
  %v1665 = vpop.f32.mrb[0].mxu0
  %1666 = vdwg.mxu0
  %v1667 = vadd.f32 %v1146, %v1664
  %v1668 = vxor.u32 %v1667, 2147483648
  %v1669 = vmul.f32 %v1668, 1.442695
  %v1670 = vpow.pop %v1669
  %v1671 = vadd.f32 %v1670, 1.0
  %v1672 = vrcp.pop %v1671
  %v1673 = vmul.f32 1.0, %v1672
  %v1674 = vtanh.pop %v1667
  %v1675 = vmul.f32 %v1673, %v1585
  %1677 = vrot.lane.b32.xlu0 %v1674, 64
  %v1678 = vpop.permute.xlu0 %1677
  %v1680 = vmul.f32 %v1673, %v1678
  %1682 = vrot.lane.b32.xlu0 %v1680, 32
  %v1683 = vpop.permute.xlu0 %1682
  %v1685 = vadd.f32 %v1675, %v1683
  %v1686 = vtanh.pop %v1685
  %1688 = vrot.lane.b32.xlu0 %v1686, 64
  %v1689 = vpop.permute.xlu0 %1688
  %v1691 = vmul.f32 %v1673, %v1689
  %1693 = vrot.lane.b32.xlu0 %v1691, 32
  %v1694 = vpop.permute.xlu0 %1693
  %v1695 = vsel %vm65, %v1694, 0
  %1697 = vmatprep.subr.mxu0 0.0
  %1698 = vmatpush1.msra.mxu0 %v1290
  %1699 = vmatprep.subr.mxu0 0.0
  %1700 = vmatpush1.msra.mxu0 %v1291
  %1701 = vmatprep.subr.mxu0 0.0
  %1702 = vmatpush1.msra.mxu0 %v1292
  %1703 = vmatprep.subr.mxu0 0.0
  %1704 = vmatpush1.msra.mxu0 %v1293
  %1705 = vmatprep.subr.mxu0 0.0
  %1706 = vmatpush1.msra.mxu0 0.0
  %1707 = vmatprep.subr.mxu0 0.0
  %1708 = vmatpush1.msra.mxu0 0.0
  %1709 = vmatprep.subr.mxu0 0.0
  %1710 = vmatpush1.msra.mxu0 0.0
  %1711 = vmatprep.subr.mxu0 0.0
  %1712 = vmatpush1.msra.mxu0 0.0
  %1713 = vmatprep.subr.mxu0 0.0
  %1714 = vmatpush1.msra.mxu0 0.0
  %1715 = vmatprep.subr.mxu0 0.0
  %1716 = vmatpush1.msra.mxu0 0.0
  %1717 = vmatprep.subr.mxu0 0.0
  %1718 = vmatpush1.msra.mxu0 0.0
  %1719 = vmatprep.subr.mxu0 0.0
  %1720 = vmatpush1.msra.mxu0 0.0
  %1721 = vmatprep.subr.mxu0 0.0
  %1722 = vmatpush1.msra.mxu0 0.0
  %1723 = vmatprep.subr.mxu0 0.0
  %1724 = vmatpush1.msra.mxu0 0.0
  %1725 = vmatprep.subr.mxu0 0.0
  %1726 = vmatpush1.msra.mxu0 0.0
  %1727 = vmatprep.subr.mxu0 0.0
  %1728 = vmatpush1.msra.mxu0 0.0
  %1729 = vmatprep.subr.mxu0 0.0
  %1730 = vmatpush1.msra.mxu0 0.0
  %1731 = vmatprep.subr.mxu0 0.0
  %1732 = vmatpush1.msra.mxu0 0.0
  %1733 = vmatprep.subr.mxu0 0.0
  %1734 = vmatpush1.msra.mxu0 0.0
  %1735 = vmatprep.subr.mxu0 0.0
  %1736 = vmatpush1.msra.mxu0 0.0
  %1737 = vmatprep.subr.mxu0 0.0
  %1738 = vmatpush1.msra.mxu0 0.0
  %1739 = vmatprep.subr.mxu0 0.0
  %1740 = vmatpush1.msra.mxu0 0.0
  %1741 = vmatprep.subr.mxu0 0.0
  %1742 = vmatpush1.msra.mxu0 0.0
  %1743 = vmatprep.subr.mxu0 0.0
  %1744 = vmatpush1.msra.mxu0 0.0
  %1745 = vmatprep.subr.mxu0 0.0
  %1746 = vmatpush1.msra.mxu0 0.0
  %1747 = vmatprep.subr.mxu0 0.0
  %1748 = vmatpush1.msra.mxu0 0.0
  %1749 = vmatprep.subr.mxu0 0.0
  %1750 = vmatpush1.msra.mxu0 0.0
  %1751 = vmatprep.subr.mxu0 0.0
  %1752 = vmatpush1.msra.mxu0 0.0
  %1753 = vmatprep.subr.mxu0 0.0
  %1754 = vmatpush1.msra.mxu0 0.0
  %1755 = vmatprep.subr.mxu0 0.0
  %1756 = vmatpush1.msra.mxu0 0.0
  %1757 = vmatprep.subr.mxu0 0.0
  %1758 = vmatpush1.msra.mxu0 0.0
  %1759 = vmatprep.subr.mxu0 0.0
  %1760 = vmatpush1.msra.mxu0 0.0
  %1761 = vmatprep.mubr.f32.mxu0 0.0
  %1762 = vmatmul.mubr.f32.gmra.mrb[0].mxu0 %v1695
  %v1763 = vpop.f32.mrb[0].mxu0
  %v1764 = vadd.f32 0.0, %v1763
  %v1765 = vpop.f32.mrb[0].mxu0
  %1766 = vdwg.mxu0
  %v1767 = vadd.f32 %v1215, %v1764
  %v1768 = vxor.u32 %v1767, 2147483648
  %v1769 = vmul.f32 %v1768, 1.442695
  %v1770 = vpow.pop %v1769
  %v1771 = vadd.f32 %v1770, 1.0
  %v1772 = vrcp.pop %v1771
  %v1773 = vmul.f32 1.0, %v1772
  %v1774 = vtanh.pop %v1767
  %v1775 = vmul.f32 %v1773, %v1685
  %1777 = vrot.lane.b32.xlu0 %v1774, 64
  %v1778 = vpop.permute.xlu0 %1777
  %v1780 = vmul.f32 %v1773, %v1778
  %1782 = vrot.lane.b32.xlu0 %v1780, 32
  %v1783 = vpop.permute.xlu0 %1782
  %v1785 = vadd.f32 %v1775, %v1783
  %v1786 = vtanh.pop %v1785
  %1788 = vrot.lane.b32.xlu0 %v1786, 64
  %v1789 = vpop.permute.xlu0 %1788
  %v1791 = vmul.f32 %v1773, %v1789
  %1793 = vrot.lane.b32.xlu0 %v1791, 32
  %v1794 = vpop.permute.xlu0 %1793
  %v1795 = vsel %vm65, %v1794, 0
  %1797 = vmatprep.subr.mxu0 0.0
  %1798 = vmatpush1.msra.mxu0 %v1290
  %1799 = vmatprep.subr.mxu0 0.0
  %1800 = vmatpush1.msra.mxu0 %v1291
  %1801 = vmatprep.subr.mxu0 0.0
  %1802 = vmatpush1.msra.mxu0 %v1292
  %1803 = vmatprep.subr.mxu0 0.0
  %1804 = vmatpush1.msra.mxu0 %v1293
  %1805 = vmatprep.subr.mxu0 0.0
  %1806 = vmatpush1.msra.mxu0 0.0
  %1807 = vmatprep.subr.mxu0 0.0
  %1808 = vmatpush1.msra.mxu0 0.0
  %1809 = vmatprep.subr.mxu0 0.0
  %1810 = vmatpush1.msra.mxu0 0.0
  %1811 = vmatprep.subr.mxu0 0.0
  %1812 = vmatpush1.msra.mxu0 0.0
  %1813 = vmatprep.subr.mxu0 0.0
  %1814 = vmatpush1.msra.mxu0 0.0
  %1815 = vmatprep.subr.mxu0 0.0
  %1816 = vmatpush1.msra.mxu0 0.0
  %1817 = vmatprep.subr.mxu0 0.0
  %1818 = vmatpush1.msra.mxu0 0.0
  %1819 = vmatprep.subr.mxu0 0.0
  %1820 = vmatpush1.msra.mxu0 0.0
  %1821 = vmatprep.subr.mxu0 0.0
  %1822 = vmatpush1.msra.mxu0 0.0
  %1823 = vmatprep.subr.mxu0 0.0
  %1824 = vmatpush1.msra.mxu0 0.0
  %1825 = vmatprep.subr.mxu0 0.0
  %1826 = vmatpush1.msra.mxu0 0.0
  %1827 = vmatprep.subr.mxu0 0.0
  %1828 = vmatpush1.msra.mxu0 0.0
  %1829 = vmatprep.subr.mxu0 0.0
  %1830 = vmatpush1.msra.mxu0 0.0
  %1831 = vmatprep.subr.mxu0 0.0
  %1832 = vmatpush1.msra.mxu0 0.0
  %1833 = vmatprep.subr.mxu0 0.0
  %1834 = vmatpush1.msra.mxu0 0.0
  %1835 = vmatprep.subr.mxu0 0.0
  %1836 = vmatpush1.msra.mxu0 0.0
  %1837 = vmatprep.subr.mxu0 0.0
  %1838 = vmatpush1.msra.mxu0 0.0
  %1839 = vmatprep.subr.mxu0 0.0
  %1840 = vmatpush1.msra.mxu0 0.0
  %1841 = vmatprep.subr.mxu0 0.0
  %1842 = vmatpush1.msra.mxu0 0.0
  %1843 = vmatprep.subr.mxu0 0.0
  %1844 = vmatpush1.msra.mxu0 0.0
  %1845 = vmatprep.subr.mxu0 0.0
  %1846 = vmatpush1.msra.mxu0 0.0
  %1847 = vmatprep.subr.mxu0 0.0
  %1848 = vmatpush1.msra.mxu0 0.0
  %1849 = vmatprep.subr.mxu0 0.0
  %1850 = vmatpush1.msra.mxu0 0.0
  %1851 = vmatprep.subr.mxu0 0.0
  %1852 = vmatpush1.msra.mxu0 0.0
  %1853 = vmatprep.subr.mxu0 0.0
  %1854 = vmatpush1.msra.mxu0 0.0
  %1855 = vmatprep.subr.mxu0 0.0
  %1856 = vmatpush1.msra.mxu0 0.0
  %1857 = vmatprep.subr.mxu0 0.0
  %1858 = vmatpush1.msra.mxu0 0.0
  %1859 = vmatprep.subr.mxu0 0.0
  %1860 = vmatpush1.msra.mxu0 0.0
  %1861 = vmatprep.mubr.f32.mxu0 0.0
  %1862 = vmatmul.mubr.f32.gmra.mrb[0].mxu0 %v1795
  %v1863 = vpop.f32.mrb[0].mxu0
  %v1864 = vadd.f32 0.0, %v1863
  %v1865 = vpop.f32.mrb[0].mxu0
  %1866 = vdwg.mxu0
  %v1867 = vadd.f32 %v1217, %v1864
  %v1868 = vxor.u32 %v1867, 2147483648
  %v1869 = vmul.f32 %v1868, 1.442695
  %v1870 = vpow.pop %v1869
  %v1871 = vadd.f32 %v1870, 1.0
  %v1872 = vrcp.pop %v1871
  %v1873 = vmul.f32 1.0, %v1872
  %v1874 = vtanh.pop %v1867
  %v1875 = vmul.f32 %v1873, %v1785
  %1877 = vrot.lane.b32.xlu0 %v1874, 64
  %v1878 = vpop.permute.xlu0 %1877
  %v1880 = vmul.f32 %v1873, %v1878
  %1882 = vrot.lane.b32.xlu0 %v1880, 32
  %v1883 = vpop.permute.xlu0 %1882
  %v1885 = vadd.f32 %v1875, %v1883
  %v1886 = vtanh.pop %v1885
  %1888 = vrot.lane.b32.xlu0 %v1886, 64
  %v1889 = vpop.permute.xlu0 %1888
  %v1891 = vmul.f32 %v1873, %v1889
  %1893 = vrot.lane.b32.xlu0 %v1891, 32
  %v1894 = vpop.permute.xlu0 %1893
  %v1895 = vsel %vm65, %v1894, 0
  %1897 = vmatprep.subr.mxu0 0.0
  %1898 = vmatpush1.msra.mxu0 %v1290
  %1899 = vmatprep.subr.mxu0 0.0
  %1900 = vmatpush1.msra.mxu0 %v1291
  %1901 = vmatprep.subr.mxu0 0.0
  %1902 = vmatpush1.msra.mxu0 %v1292
  %1903 = vmatprep.subr.mxu0 0.0
  %1904 = vmatpush1.msra.mxu0 %v1293
  %1905 = vmatprep.subr.mxu0 0.0
  %1906 = vmatpush1.msra.mxu0 0.0
  %1907 = vmatprep.subr.mxu0 0.0
  %1908 = vmatpush1.msra.mxu0 0.0
  %1909 = vmatprep.subr.mxu0 0.0
  %1910 = vmatpush1.msra.mxu0 0.0
  %1911 = vmatprep.subr.mxu0 0.0
  %1912 = vmatpush1.msra.mxu0 0.0
  %1913 = vmatprep.subr.mxu0 0.0
  %1914 = vmatpush1.msra.mxu0 0.0
  %1915 = vmatprep.subr.mxu0 0.0
  %1916 = vmatpush1.msra.mxu0 0.0
  %1917 = vmatprep.subr.mxu0 0.0
  %1918 = vmatpush1.msra.mxu0 0.0
  %1919 = vmatprep.subr.mxu0 0.0
  %1920 = vmatpush1.msra.mxu0 0.0
  %1921 = vmatprep.subr.mxu0 0.0
  %1922 = vmatpush1.msra.mxu0 0.0
  %1923 = vmatprep.subr.mxu0 0.0
  %1924 = vmatpush1.msra.mxu0 0.0
  %1925 = vmatprep.subr.mxu0 0.0
  %1926 = vmatpush1.msra.mxu0 0.0
  %1927 = vmatprep.subr.mxu0 0.0
  %1928 = vmatpush1.msra.mxu0 0.0
  %1929 = vmatprep.subr.mxu0 0.0
  %1930 = vmatpush1.msra.mxu0 0.0
  %1931 = vmatprep.subr.mxu0 0.0
  %1932 = vmatpush1.msra.mxu0 0.0
  %1933 = vmatprep.subr.mxu0 0.0
  %1934 = vmatpush1.msra.mxu0 0.0
  %1935 = vmatprep.subr.mxu0 0.0
  %1936 = vmatpush1.msra.mxu0 0.0
  %1937 = vmatprep.subr.mxu0 0.0
  %1938 = vmatpush1.msra.mxu0 0.0
  %1939 = vmatprep.subr.mxu0 0.0
  %1940 = vmatpush1.msra.mxu0 0.0
  %1941 = vmatprep.subr.mxu0 0.0
  %1942 = vmatpush1.msra.mxu0 0.0
  %1943 = vmatprep.subr.mxu0 0.0
  %1944 = vmatpush1.msra.mxu0 0.0
  %1945 = vmatprep.subr.mxu0 0.0
  %1946 = vmatpush1.msra.mxu0 0.0
  %1947 = vmatprep.subr.mxu0 0.0
  %1948 = vmatpush1.msra.mxu0 0.0
  %1949 = vmatprep.subr.mxu0 0.0
  %1950 = vmatpush1.msra.mxu0 0.0
  %1951 = vmatprep.subr.mxu0 0.0
  %1952 = vmatpush1.msra.mxu0 0.0
  %1953 = vmatprep.subr.mxu0 0.0
  %1954 = vmatpush1.msra.mxu0 0.0
  %1955 = vmatprep.subr.mxu0 0.0
  %1956 = vmatpush1.msra.mxu0 0.0
  %1957 = vmatprep.subr.mxu0 0.0
  %1958 = vmatpush1.msra.mxu0 0.0
  %1959 = vmatprep.subr.mxu0 0.0
  %1960 = vmatpush1.msra.mxu0 0.0
  %1961 = vmatprep.mubr.f32.mxu0 0.0
  %1962 = vmatmul.mubr.f32.gmra.mrb[0].mxu0 %v1895
  %v1963 = vpop.f32.mrb[0].mxu0
  %v1964 = vadd.f32 0.0, %v1963
  %v1965 = vpop.f32.mrb[0].mxu0
  %1966 = vdwg.mxu0
  %v1967 = vadd.f32 %v1286, %v1964
  %v1968 = vxor.u32 %v1967, 2147483648
  %v1969 = vmul.f32 %v1968, 1.442695
  %v1970 = vpow.pop %v1969
  %v1971 = vadd.f32 %v1970, 1.0
  %v1972 = vrcp.pop %v1971
  %v1973 = vmul.f32 1.0, %v1972
  %v1974 = vtanh.pop %v1967
  %v1975 = vmul.f32 %v1973, %v1885
  %1977 = vrot.lane.b32.xlu0 %v1974, 64
  %v1978 = vpop.permute.xlu0 %1977
  %v1980 = vmul.f32 %v1973, %v1978
  %1982 = vrot.lane.b32.xlu0 %v1980, 32
  %v1983 = vpop.permute.xlu0 %1982
  %v1985 = vadd.f32 %v1975, %v1983
  %v1986 = vtanh.pop %v1985
  %1988 = vrot.lane.b32.xlu0 %v1986, 64
  %v1989 = vpop.permute.xlu0 %1988
  %v1991 = vmul.f32 %v1973, %v1989
  %1993 = vrot.lane.b32.xlu0 %v1991, 32
  %v1994 = vpop.permute.xlu0 %1993
  %v1995 = vsel %vm65, %v1994, 0
  %1997 = vmatprep.subr.mxu0 0.0
  %1998 = vmatpush1.msra.mxu0 %v1290
  %1999 = vmatprep.subr.mxu0 0.0
  %2000 = vmatpush1.msra.mxu0 %v1291
  %2001 = vmatprep.subr.mxu0 0.0
  %2002 = vmatpush1.msra.mxu0 %v1292
  %2003 = vmatprep.subr.mxu0 0.0
  %2004 = vmatpush1.msra.mxu0 %v1293
  %2005 = vmatprep.subr.mxu0 0.0
  %2006 = vmatpush1.msra.mxu0 0.0
  %2007 = vmatprep.subr.mxu0 0.0
  %2008 = vmatpush1.msra.mxu0 0.0
  %2009 = vmatprep.subr.mxu0 0.0
  %2010 = vmatpush1.msra.mxu0 0.0
  %2011 = vmatprep.subr.mxu0 0.0
  %2012 = vmatpush1.msra.mxu0 0.0
  %2013 = vmatprep.subr.mxu0 0.0
  %2014 = vmatpush1.msra.mxu0 0.0
  %2015 = vmatprep.subr.mxu0 0.0
  %2016 = vmatpush1.msra.mxu0 0.0
  %2017 = vmatprep.subr.mxu0 0.0
  %2018 = vmatpush1.msra.mxu0 0.0
  %2019 = vmatprep.subr.mxu0 0.0
  %2020 = vmatpush1.msra.mxu0 0.0
  %2021 = vmatprep.subr.mxu0 0.0
  %2022 = vmatpush1.msra.mxu0 0.0
  %2023 = vmatprep.subr.mxu0 0.0
  %2024 = vmatpush1.msra.mxu0 0.0
  %2025 = vmatprep.subr.mxu0 0.0
  %2026 = vmatpush1.msra.mxu0 0.0
  %2027 = vmatprep.subr.mxu0 0.0
  %2028 = vmatpush1.msra.mxu0 0.0
  %2029 = vmatprep.subr.mxu0 0.0
  %2030 = vmatpush1.msra.mxu0 0.0
  %2031 = vmatprep.subr.mxu0 0.0
  %2032 = vmatpush1.msra.mxu0 0.0
  %2033 = vmatprep.subr.mxu0 0.0
  %2034 = vmatpush1.msra.mxu0 0.0
  %2035 = vmatprep.subr.mxu0 0.0
  %2036 = vmatpush1.msra.mxu0 0.0
  %2037 = vmatprep.subr.mxu0 0.0
  %2038 = vmatpush1.msra.mxu0 0.0
  %2039 = vmatprep.subr.mxu0 0.0
  %2040 = vmatpush1.msra.mxu0 0.0
  %2041 = vmatprep.subr.mxu0 0.0
  %2042 = vmatpush1.msra.mxu0 0.0
  %2043 = vmatprep.subr.mxu0 0.0
  %2044 = vmatpush1.msra.mxu0 0.0
  %2045 = vmatprep.subr.mxu0 0.0
  %2046 = vmatpush1.msra.mxu0 0.0
  %2047 = vmatprep.subr.mxu0 0.0
  %2048 = vmatpush1.msra.mxu0 0.0
  %2049 = vmatprep.subr.mxu0 0.0
  %2050 = vmatpush1.msra.mxu0 0.0
  %2051 = vmatprep.subr.mxu0 0.0
  %2052 = vmatpush1.msra.mxu0 0.0
  %2053 = vmatprep.subr.mxu0 0.0
  %2054 = vmatpush1.msra.mxu0 0.0
  %2055 = vmatprep.subr.mxu0 0.0
  %2056 = vmatpush1.msra.mxu0 0.0
  %2057 = vmatprep.subr.mxu0 0.0
  %2058 = vmatpush1.msra.mxu0 0.0
  %2059 = vmatprep.subr.mxu0 0.0
  %2060 = vmatpush1.msra.mxu0 0.0
  %2061 = vmatprep.mubr.f32.mxu0 0.0
  %2062 = vmatmul.mubr.f32.gmra.mrb[0].mxu0 %v1995
  %v2063 = vpop.f32.mrb[0].mxu0
  %v2064 = vadd.f32 0.0, %v2063
  %v2065 = vpop.f32.mrb[0].mxu0
  %2066 = vdwg.mxu0
  %v2067 = vadd.f32 %v1288, %v2064
  %v2068 = vxor.u32 %v2067, 2147483648
  %v2069 = vmul.f32 %v2068, 1.442695
  %v2070 = vpow.pop %v2069
  %v2071 = vadd.f32 %v2070, 1.0
  %v2072 = vrcp.pop %v2071
  %v2073 = vmul.f32 1.0, %v2072
  %v2074 = vtanh.pop %v2067
  %v2075 = vmul.f32 %v2073, %v1985
  %2077 = vrot.lane.b32.xlu0 %v2074, 64
  %v2078 = vpop.permute.xlu0 %2077
  %v2080 = vmul.f32 %v2073, %v2078
  %2082 = vrot.lane.b32.xlu0 %v2080, 32
  %v2083 = vpop.permute.xlu0 %2082
  %v2085 = vadd.f32 %v2075, %v2083
  %v2086 = vtanh.pop %v2085
  %2088 = vrot.lane.b32.xlu0 %v2086, 64
  %v2089 = vpop.permute.xlu0 %2088
  %v2091 = vmul.f32 %v2073, %v2089
  %v2092 = vld [vmem:[%s14] sm:$0xff]
  %v2093 = vld [vmem:[%s14 + $0x8] sm:$0xff]
  %v2094 = vld [vmem:[%s14 + $0x10] sm:$0xff]
  %v2095 = vld [vmem:[%s14 + $0x18] sm:$0xff]
  %v2096 = vld [vmem:[%s15] sm:$0x1]
  %v2098 = vlaneseq
  %v2099 = vshrl.u32 %v2098, 7
  %v2100 = vsub.s32 0, %v2099
  %v2101 = vrot.slane %v2096, %v2100
  %2104 = vrot.lane.b32.xlu0 %v2091, 32
  %v2105 = vpop.permute.xlu0 %2104
  %v2106 = vsel %vm65, %v2105, 0
  %2108 = vmatprep.subr.mxu0 0.0
  %2109 = vmatpush1.msra.mxu0 %v2092
  %2110 = vmatprep.subr.mxu0 0.0
  %2111 = vmatpush1.msra.mxu0 %v2093
  %2112 = vmatprep.subr.mxu0 0.0
  %2113 = vmatpush1.msra.mxu0 %v2094
  %2114 = vmatprep.subr.mxu0 0.0
  %2115 = vmatpush1.msra.mxu0 %v2095
  %2116 = vmatprep.subr.mxu0 0.0
  %2117 = vmatpush1.msra.mxu0 0.0
  %2118 = vmatprep.subr.mxu0 0.0
  %2119 = vmatpush1.msra.mxu0 0.0
  %2120 = vmatprep.subr.mxu0 0.0
  %2121 = vmatpush1.msra.mxu0 0.0
  %2122 = vmatprep.subr.mxu0 0.0
  %2123 = vmatpush1.msra.mxu0 0.0
  %2124 = vmatprep.subr.mxu0 0.0
  %2125 = vmatpush1.msra.mxu0 0.0
  %2126 = vmatprep.subr.mxu0 0.0
  %2127 = vmatpush1.msra.mxu0 0.0
  %2128 = vmatprep.subr.mxu0 0.0
  %2129 = vmatpush1.msra.mxu0 0.0
  %2130 = vmatprep.subr.mxu0 0.0
  %2131 = vmatpush1.msra.mxu0 0.0
  %2132 = vmatprep.subr.mxu0 0.0
  %2133 = vmatpush1.msra.mxu0 0.0
  %2134 = vmatprep.subr.mxu0 0.0
  %2135 = vmatpush1.msra.mxu0 0.0
  %2136 = vmatprep.subr.mxu0 0.0
  %2137 = vmatpush1.msra.mxu0 0.0
  %2138 = vmatprep.subr.mxu0 0.0
  %2139 = vmatpush1.msra.mxu0 0.0
  %2140 = vmatprep.subr.mxu0 0.0
  %2141 = vmatpush1.msra.mxu0 0.0
  %2142 = vmatprep.subr.mxu0 0.0
  %2143 = vmatpush1.msra.mxu0 0.0
  %2144 = vmatprep.subr.mxu0 0.0
  %2145 = vmatpush1.msra.mxu0 0.0
  %2146 = vmatprep.subr.mxu0 0.0
  %2147 = vmatpush1.msra.mxu0 0.0
  %2148 = vmatprep.subr.mxu0 0.0
  %2149 = vmatpush1.msra.mxu0 0.0
  %2150 = vmatprep.subr.mxu0 0.0
  %2151 = vmatpush1.msra.mxu0 0.0
  %2152 = vmatprep.subr.mxu0 0.0
  %2153 = vmatpush1.msra.mxu0 0.0
  %2154 = vmatprep.subr.mxu0 0.0
  %2155 = vmatpush1.msra.mxu0 0.0
  %2156 = vmatprep.subr.mxu0 0.0
  %2157 = vmatpush1.msra.mxu0 0.0
  %2158 = vmatprep.subr.mxu0 0.0
  %2159 = vmatpush1.msra.mxu0 0.0
  %2160 = vmatprep.subr.mxu0 0.0
  %2161 = vmatpush1.msra.mxu0 0.0
  %2162 = vmatprep.subr.mxu0 0.0
  %2163 = vmatpush1.msra.mxu0 0.0
  %2164 = vmatprep.subr.mxu0 0.0
  %2165 = vmatpush1.msra.mxu0 0.0
  %2166 = vmatprep.subr.mxu0 0.0
  %2167 = vmatpush1.msra.mxu0 0.0
  %2168 = vmatprep.subr.mxu0 0.0
  %2169 = vmatpush1.msra.mxu0 0.0
  %2170 = vmatprep.subr.mxu0 0.0
  %2171 = vmatpush1.msra.mxu0 0.0
  %2172 = vmatprep.mubr.f32.mxu0 0.0
  %2173 = vmatmul.mubr.f32.gmra.mrb[0].mxu0 %v2106
  %v2174 = vpop.f32.mrb[0].mxu0
  %v2175 = vadd.f32 %v2101, %v2174
  %v2176 = vpop.f32.mrb[0].mxu0
  %2177 = vdwg.mxu0
  %vm2178 = vcmask 130048
  %2179 = vst.msk [vmem:[%s16] sm:$0xff] %vm2178, %v2175
  // Predicated region
  $region66: #{forward.1} parent=0 // pred_check
    _
  $region67: #{forward.1} parent=0 // pred_check_branch
    %2181 = sbr.rel (0) target = $region69
  $region68: #{forward.1} parent=0 // pred_region
    _
  $region69: #{forward.1} parent=0 // pred_fallthru
    _
  // Predicated region
  $region70: #{forward.1} parent=0 // pred_check
    _
  $region71: #{forward.1} parent=0 // pred_check_branch
    %2183 = sbr.rel (0) target = $region73
  $region72: #{forward.1} parent=0 // pred_region
    _
  $region73: #{forward.1} parent=0 // pred_fallthru
    _

</llo_original>
